<compile_context>
chip_gen: v7x
topology: tpu7x:2x2x1
jax: 0.10.0
libtpu: 0.0.40
codegen_flags: <defaults>
</compile_context>

<pallas_src>
import functools

import jax
import jax.numpy as jnp
from jax import lax
from jax.experimental import pallas as pl
from jax.experimental.pallas import tpu as pltpu

DIM = 32          # model dim
N_HEADS = 4       # attention heads -> head_dim = 8
HIDDEN = 32       # FFN hidden dim
EPS = 1e-5        # torch.nn.LayerNorm default eps


def _layernorm(x, gamma, beta):
    mu = jnp.mean(x, axis=-1, keepdims=True)
    var = jnp.mean((x - mu) ** 2, axis=-1, keepdims=True)
    return (x - mu) * lax.rsqrt(var + EPS) * gamma + beta


def transformer_block_kernel(x_ref, wqkv_ref, wo_ref, misc_ref, o_ref, *,
                             n_seq, seq_len, n_heads):
    # x_ref   : (T, D) f32    flattened tokens of n_seq sequences (T = n_seq*seq_len)
    # wqkv_ref: (D, 3D) bf16  packed [Wq*scale | Wk | Wv], head-major columns
    # wo_ref  : (D, D) bf16   output projection
    # misc_ref: (D+HID+6, W)  f32 packed [w1; w2; b1; b2; g1; be1; g2; be2]
    # o_ref   : (T, D) f32
    T, D = x_ref.shape
    hd = D // n_heads
    hid = misc_ref.shape[0] - D - 6

    x = x_ref[...]                                   # (T, D) f32 (kept for residual)
    xb = x.astype(jnp.bfloat16)

    # ---- single fused QKV projection: one (T, D) @ (D, 3D) MXU push ----
    qkv = jnp.dot(xb, wqkv_ref[...], preferred_element_type=jnp.float32)   # (T, 3D)

    # ---- per-sequence, per-head attention (no packed (T,T) scores, no mask ops) ----
    attn_out = jnp.zeros((T, D), jnp.float32)
    for h in range(n_heads):
        qh = qkv[:, h * hd:(h + 1) * hd].reshape(n_seq, seq_len, hd).astype(jnp.bfloat16)
        kh = qkv[:, D + h * hd:D + (h + 1) * hd].reshape(n_seq, seq_len, hd).astype(jnp.bfloat16)
        vh = qkv[:, 2 * D + h * hd:2 * D + (h + 1) * hd].reshape(n_seq, seq_len, hd).astype(jnp.bfloat16)

        s = jnp.einsum("bqd,bkd->bqk", qh, kh,
                       preferred_element_type=jnp.float32)        # (n_seq, S, S)
        # TODO(synk): a user-supplied additive attention mask (mask != None) would be added to `s` here.
        m = jnp.max(s, axis=-1, keepdims=True)
        e = jnp.exp(s - m)
        p = e / jnp.sum(e, axis=-1, keepdims=True)                 # exact softmax
        ctx = jnp.einsum("bqk,bkd->bqd", p.astype(jnp.bfloat16), vh,
                         preferred_element_type=jnp.float32)       # (n_seq, S, hd)

        # head h's contribution to the output projection (rows h*hd:(h+1)*hd of Wo)
        attn_out = attn_out + jnp.dot(
            ctx.reshape(T, hd).astype(jnp.bfloat16),
            wo_ref[h * hd:(h + 1) * hd, :],
            preferred_element_type=jnp.float32)                    # (T, D)

    # ---- unpack FFN / LayerNorm params from the misc slab ----
    misc = misc_ref[...]
    w1 = misc[:D, :hid].astype(jnp.bfloat16)                       # (D, HID)
    w2 = misc[D:D + hid, :D].astype(jnp.bfloat16)                  # (HID, D)
    b1 = misc[D + hid + 0:D + hid + 1, :hid]                       # (1, HID)
    b2 = misc[D + hid + 1:D + hid + 2, :D]                         # (1, D)
    g1 = misc[D + hid + 2:D + hid + 3, :D]
    be1 = misc[D + hid + 3:D + hid + 4, :D]
    g2 = misc[D + hid + 4:D + hid + 5, :D]
    be2 = misc[D + hid + 5:D + hid + 6, :D]

    # ---- residual + LayerNorm (atn_norm); dropout = identity ----
    h1 = _layernorm(x + attn_out, g1, be1)

    # ---- FeedForward (bf16 operands, f32 accumulation) ----
    ff = jnp.maximum(jnp.dot(h1.astype(jnp.bfloat16), w1,
                             preferred_element_type=jnp.float32) + b1, 0.0)
    ff = jnp.dot(ff.astype(jnp.bfloat16), w2,
                 preferred_element_type=jnp.float32) + b2

    # ---- residual + LayerNorm (ffn_norm) ----
    o_ref[...] = _layernorm(h1 + ff, g2, be2)


def transformer_block(x, params, *, batch_block=None):
    B, S, D = x.shape
    H = N_HEADS
    hd = D // H
    (wq, wk, wv, wo, w1, b1, w2, b2, g1, be1, g2, be2) = params
    hid = w1.shape[1]

    # One grid step covers all tokens by default (single TensorCore on v5e/v6e).
    # TODO(synk): on v7x pass batch_block=B//2 (grid=(2,), "parallel") once the
    # per-step token count is large enough to amortize the grid-step overhead.
    if batch_block is None:
        batch_block = B
    assert B % batch_block == 0
    n_blocks = B // batch_block
    t_tile = batch_block * S

    # ---- host-side one-time packing of parameters ----
    scale = float(hd) ** (-0.5)
    wqkv = jnp.concatenate([wq * scale, wk, wv], axis=1).astype(jnp.bfloat16)  # (D, 3D)
    wo_b = wo.astype(jnp.bfloat16)                                             # (D, D)

    Wc = max(D, hid)

    def padw(a):
        return jnp.pad(a, ((0, 0), (0, Wc - a.shape[1])))

    misc = jnp.concatenate(
        [padw(w1), padw(w2), padw(b1), padw(b2),
         padw(g1), padw(be1), padw(g2), padw(be2)], axis=0)                    # (D+hid+6, Wc)

    x2d = x.reshape(B * S, D)    # activations handed to the kernel as 2-D tokens

    kernel = functools.partial(transformer_block_kernel,
                               n_seq=batch_block, seq_len=S, n_heads=H)

    grid_spec = pltpu.PrefetchScalarGridSpec(
        num_scalar_prefetch=0,
        grid=(n_blocks,),
        in_specs=[
            pl.BlockSpec((t_tile, D), lambda i: (i, 0)),
            pl.BlockSpec(wqkv.shape, lambda i: (0, 0)),   # constant maps: weights stay resident
            pl.BlockSpec(wo_b.shape, lambda i: (0, 0)),
            pl.BlockSpec(misc.shape, lambda i: (0, 0)),
        ],
        out_specs=pl.BlockSpec((t_tile, D), lambda i: (i, 0)),
    )

    out2d = pl.pallas_call(
        kernel,
        out_shape=jax.ShapeDtypeStruct((B * S, D), jnp.float32),
        grid_spec=grid_spec,
        compiler_params=pltpu.CompilerParams(dimension_semantics=("parallel",)),
    )(x2d, wqkv, wo_b, misc)
    return out2d.reshape(B, S, D)


def reference_block(x, params):
    (wq, wk, wv, wo, w1, b1, w2, b2, g1, be1, g2, be2) = params
    B, S, D = x.shape
    hd = D // N_HEADS

    def split_heads(t):  # (B,S,D) -> (B,H,S,hd)
        return t.reshape(B, S, N_HEADS, hd).transpose(0, 2, 1, 3)

    q, k, v = split_heads(x @ wq), split_heads(x @ wk), split_heads(x @ wv)
    scores = jnp.einsum("bhqd,bhkd->bhqk", q, k) * hd ** (-0.5)
    attn = jax.nn.softmax(scores, axis=-1)
    out = jnp.einsum("bhqk,bhkd->bhqd", attn, v).transpose(0, 2, 1, 3).reshape(B, S, D)
    out = out @ wo
    h = _layernorm(x + out, g1, be1)
    ff = jnp.maximum(h @ w1 + b1, 0.0) @ w2 + b2
    return _layernorm(h + ff, g2, be2)


def make_params(key):
    ks = jax.random.split(key, 8)
    scale = 0.1
    wq = scale * jax.random.normal(ks[0], (DIM, DIM), jnp.float32)
    wk = scale * jax.random.normal(ks[1], (DIM, DIM), jnp.float32)
    wv = scale * jax.random.normal(ks[2], (DIM, DIM), jnp.float32)
    wo = scale * jax.random.normal(ks[3], (DIM, DIM), jnp.float32)
    w1 = scale * jax.random.normal(ks[4], (DIM, HIDDEN), jnp.float32)
    b1 = scale * jax.random.normal(ks[5], (1, HIDDEN), jnp.float32)
    w2 = scale * jax.random.normal(ks[6], (HIDDEN, DIM), jnp.float32)
    b2 = scale * jax.random.normal(ks[7], (1, DIM), jnp.float32)
    g1 = jnp.ones((1, DIM), jnp.float32)
    be1 = jnp.zeros((1, DIM), jnp.float32)
    g2 = jnp.ones((1, DIM), jnp.float32)
    be2 = jnp.zeros((1, DIM), jnp.float32)
    return (wq, wk, wv, wo, w1, b1, w2, b2, g1, be1, g2, be2)


if __name__ == "__main__":
    key = jax.random.PRNGKey(0)
    k_x, k_p = jax.random.split(key)
    B, S = 2, 8
    x = jax.random.normal(k_x, (B, S, DIM), jnp.float32)
    params = make_params(k_p)

    out = jax.block_until_ready(transformer_block(x, params))
    ref = reference_block(x, params)

    assert out.shape == (B, S, DIM)
    # Tolerance accounts for bf16 matmul operands (f32 accumulation).
    assert jnp.allclose(out, ref, atol=2e-2, rtol=2e-2), "mismatch vs JAX reference"
    print("KERNEL_OK")
</pallas_src>

<mosaic_0001>
module attributes {stable_mosaic.version = 11 : i64} {
  func.func @transformer_block_kernel(%arg0: i32, %arg1: memref<16x32xf32, #tpu.memory_space<vmem>>, %arg2: memref<32x96xbf16, #tpu.memory_space<vmem>>, %arg3: memref<32x32xbf16, #tpu.memory_space<vmem>>, %arg4: memref<70x32xf32, #tpu.memory_space<vmem>>, %arg5: memref<16x32xf32, #tpu.memory_space<vmem>>) attributes {dimension_semantics = [#tpu.dimension_semantics<parallel>], iteration_bounds = array<i64: 1>, scalar_prefetch = 0 : i64, scratch_operands = 0 : i64, tpu.core_type = #tpu.core_type<tc>, window_params = [{transform_indices = @transform_0, window_bounds = array<i64: 16, 32>}, {pipeline_mode = #tpu.pipeline_mode<synchronous>, transform_indices = @transform_1, window_bounds = array<i64: 32, 96>}, {pipeline_mode = #tpu.pipeline_mode<synchronous>, transform_indices = @transform_2, window_bounds = array<i64: 32, 32>}, {pipeline_mode = #tpu.pipeline_mode<synchronous>, transform_indices = @transform_3, window_bounds = array<i64: 70, 32>}, {transform_indices = @transform_4, window_bounds = array<i64: 16, 32>}]} {
    %c0 = arith.constant 0 : index
    %c0_0 = arith.constant 0 : index
    %0 = vector.load %arg1[%c0, %c0_0] : memref<16x32xf32, #tpu.memory_space<vmem>>, vector<16x32xf32>
    %1 = arith.truncf %0 : vector<16x32xf32> to vector<16x32xbf16>
    %c0_1 = arith.constant 0 : index
    %c0_2 = arith.constant 0 : index
    %2 = vector.load %arg2[%c0_1, %c0_2] : memref<32x96xbf16, #tpu.memory_space<vmem>>, vector<32x96xbf16>
    %cst = arith.constant dense<0.000000e+00> : vector<16x96xf32>
    %3 = tpu.matmul %1, %2, %cst {dimension_numbers = #tpu.dot_dimension_numbers<[1], [0], [0], [1], [0, 0, 1, 1], [], []>} : vector<16x32xbf16>, vector<32x96xbf16>, vector<16x96xf32> -> vector<16x96xf32>
    %cst_3 = arith.constant 0.000000e+00 : f32
    %4 = vector.broadcast %cst_3 : f32 to vector<16x32xf32>
    %5 = vector.extract_strided_slice %3 {offsets = [0, 0], sizes = [16, 8], strides = [1, 1]} : vector<16x96xf32> to vector<16x8xf32>
    %6 = vector.shape_cast %5 : vector<16x8xf32> to vector<2x8x8xf32>
    %7 = arith.truncf %6 : vector<2x8x8xf32> to vector<2x8x8xbf16>
    %8 = vector.extract_strided_slice %3 {offsets = [0, 32], sizes = [16, 8], strides = [1, 1]} : vector<16x96xf32> to vector<16x8xf32>
    %9 = vector.shape_cast %8 : vector<16x8xf32> to vector<2x8x8xf32>
    %10 = arith.truncf %9 : vector<2x8x8xf32> to vector<2x8x8xbf16>
    %11 = vector.extract_strided_slice %3 {offsets = [0, 64], sizes = [16, 8], strides = [1, 1]} : vector<16x96xf32> to vector<16x8xf32>
    %12 = vector.shape_cast %11 : vector<16x8xf32> to vector<2x8x8xf32>
    %13 = arith.truncf %12 : vector<2x8x8xf32> to vector<2x8x8xbf16>
    "tpu.trace_start"() <{level = 10 : i32, message = "bqd,bkd->bqk"}> : () -> ()
    %cst_4 = arith.constant dense<0.000000e+00> : vector<2x8x8xf32>
    %14 = tpu.matmul %7, %10, %cst_4 {dimension_numbers = #tpu.dot_dimension_numbers<[2], [2], [1], [1], [0, 0, 0, 1, 1, 1], [0], [0]>} : vector<2x8x8xbf16>, vector<2x8x8xbf16>, vector<2x8x8xf32> -> vector<2x8x8xf32>
    "tpu.trace_stop"() : () -> ()
    %cst_5 = arith.constant dense<0xFF800000> : vector<2x8xf32>
    %15 = vector.multi_reduction <maximumf>, %14, %cst_5 [2] : vector<2x8x8xf32> to vector<2x8xf32>
    %16 = vector.shape_cast %15 : vector<2x8xf32> to vector<2x8x1xf32>
    %17 = vector.broadcast %16 : vector<2x8x1xf32> to vector<2x8x8xf32>
    %18 = arith.subf %14, %17 : vector<2x8x8xf32>
    %19 = math.exp %18 : vector<2x8x8xf32>
    %cst_6 = arith.constant dense<0.000000e+00> : vector<2x8xf32>
    %20 = vector.multi_reduction <add>, %19, %cst_6 [2] : vector<2x8x8xf32> to vector<2x8xf32>
    %21 = vector.shape_cast %20 : vector<2x8xf32> to vector<2x8x1xf32>
    %22 = vector.broadcast %21 : vector<2x8x1xf32> to vector<2x8x8xf32>
    %23 = arith.divf %19, %22 : vector<2x8x8xf32>
    %24 = arith.truncf %23 : vector<2x8x8xf32> to vector<2x8x8xbf16>
    "tpu.trace_start"() <{level = 10 : i32, message = "bqk,bkd->bqd"}> : () -> ()
    %cst_7 = arith.constant dense<0.000000e+00> : vector<2x8x8xf32>
    %25 = tpu.matmul %24, %13, %cst_7 {dimension_numbers = #tpu.dot_dimension_numbers<[2], [1], [1], [2], [0, 0, 0, 1, 1, 2], [0], [0]>} : vector<2x8x8xbf16>, vector<2x8x8xbf16>, vector<2x8x8xf32> -> vector<2x8x8xf32>
    "tpu.trace_stop"() : () -> ()
    %26 = vector.shape_cast %25 : vector<2x8x8xf32> to vector<16x8xf32>
    %27 = arith.truncf %26 : vector<16x8xf32> to vector<16x8xbf16>
    %c0_8 = arith.constant 0 : index
    %c0_9 = arith.constant 0 : index
    %28 = vector.load %arg3[%c0_8, %c0_9] : memref<32x32xbf16, #tpu.memory_space<vmem>>, vector<8x32xbf16>
    %cst_10 = arith.constant dense<0.000000e+00> : vector<16x32xf32>
    %29 = tpu.matmul %27, %28, %cst_10 {dimension_numbers = #tpu.dot_dimension_numbers<[1], [0], [0], [1], [0, 0, 1, 1], [], []>} : vector<16x8xbf16>, vector<8x32xbf16>, vector<16x32xf32> -> vector<16x32xf32>
    %30 = arith.addf %4, %29 : vector<16x32xf32>
    %31 = vector.extract_strided_slice %3 {offsets = [0, 8], sizes = [16, 8], strides = [1, 1]} : vector<16x96xf32> to vector<16x8xf32>
    %32 = vector.shape_cast %31 : vector<16x8xf32> to vector<2x8x8xf32>
    %33 = arith.truncf %32 : vector<2x8x8xf32> to vector<2x8x8xbf16>
    %34 = vector.extract_strided_slice %3 {offsets = [0, 40], sizes = [16, 8], strides = [1, 1]} : vector<16x96xf32> to vector<16x8xf32>
    %35 = vector.shape_cast %34 : vector<16x8xf32> to vector<2x8x8xf32>
    %36 = arith.truncf %35 : vector<2x8x8xf32> to vector<2x8x8xbf16>
    %37 = vector.extract_strided_slice %3 {offsets = [0, 72], sizes = [16, 8], strides = [1, 1]} : vector<16x96xf32> to vector<16x8xf32>
    %38 = vector.shape_cast %37 : vector<16x8xf32> to vector<2x8x8xf32>
    %39 = arith.truncf %38 : vector<2x8x8xf32> to vector<2x8x8xbf16>
    "tpu.trace_start"() <{level = 10 : i32, message = "bqd,bkd->bqk"}> : () -> ()
    %cst_11 = arith.constant dense<0.000000e+00> : vector<2x8x8xf32>
    %40 = tpu.matmul %33, %36, %cst_11 {dimension_numbers = #tpu.dot_dimension_numbers<[2], [2], [1], [1], [0, 0, 0, 1, 1, 1], [0], [0]>} : vector<2x8x8xbf16>, vector<2x8x8xbf16>, vector<2x8x8xf32> -> vector<2x8x8xf32>
    "tpu.trace_stop"() : () -> ()
    %cst_12 = arith.constant dense<0xFF800000> : vector<2x8xf32>
    %41 = vector.multi_reduction <maximumf>, %40, %cst_12 [2] : vector<2x8x8xf32> to vector<2x8xf32>
    %42 = vector.shape_cast %41 : vector<2x8xf32> to vector<2x8x1xf32>
    %43 = vector.broadcast %42 : vector<2x8x1xf32> to vector<2x8x8xf32>
    %44 = arith.subf %40, %43 : vector<2x8x8xf32>
    %45 = math.exp %44 : vector<2x8x8xf32>
    %cst_13 = arith.constant dense<0.000000e+00> : vector<2x8xf32>
    %46 = vector.multi_reduction <add>, %45, %cst_13 [2] : vector<2x8x8xf32> to vector<2x8xf32>
    %47 = vector.shape_cast %46 : vector<2x8xf32> to vector<2x8x1xf32>
    %48 = vector.broadcast %47 : vector<2x8x1xf32> to vector<2x8x8xf32>
    %49 = arith.divf %45, %48 : vector<2x8x8xf32>
    %50 = arith.truncf %49 : vector<2x8x8xf32> to vector<2x8x8xbf16>
    "tpu.trace_start"() <{level = 10 : i32, message = "bqk,bkd->bqd"}> : () -> ()
    %cst_14 = arith.constant dense<0.000000e+00> : vector<2x8x8xf32>
    %51 = tpu.matmul %50, %39, %cst_14 {dimension_numbers = #tpu.dot_dimension_numbers<[2], [1], [1], [2], [0, 0, 0, 1, 1, 2], [0], [0]>} : vector<2x8x8xbf16>, vector<2x8x8xbf16>, vector<2x8x8xf32> -> vector<2x8x8xf32>
    "tpu.trace_stop"() : () -> ()
    %52 = vector.shape_cast %51 : vector<2x8x8xf32> to vector<16x8xf32>
    %53 = arith.truncf %52 : vector<16x8xf32> to vector<16x8xbf16>
    %c8 = arith.constant 8 : index
    %c0_15 = arith.constant 0 : index
    %54 = vector.load %arg3[%c8, %c0_15] : memref<32x32xbf16, #tpu.memory_space<vmem>>, vector<8x32xbf16>
    %cst_16 = arith.constant dense<0.000000e+00> : vector<16x32xf32>
    %55 = tpu.matmul %53, %54, %cst_16 {dimension_numbers = #tpu.dot_dimension_numbers<[1], [0], [0], [1], [0, 0, 1, 1], [], []>} : vector<16x8xbf16>, vector<8x32xbf16>, vector<16x32xf32> -> vector<16x32xf32>
    %56 = arith.addf %30, %55 : vector<16x32xf32>
    %57 = vector.extract_strided_slice %3 {offsets = [0, 16], sizes = [16, 8], strides = [1, 1]} : vector<16x96xf32> to vector<16x8xf32>
    %58 = vector.shape_cast %57 : vector<16x8xf32> to vector<2x8x8xf32>
    %59 = arith.truncf %58 : vector<2x8x8xf32> to vector<2x8x8xbf16>
    %60 = vector.extract_strided_slice %3 {offsets = [0, 48], sizes = [16, 8], strides = [1, 1]} : vector<16x96xf32> to vector<16x8xf32>
    %61 = vector.shape_cast %60 : vector<16x8xf32> to vector<2x8x8xf32>
    %62 = arith.truncf %61 : vector<2x8x8xf32> to vector<2x8x8xbf16>
    %63 = vector.extract_strided_slice %3 {offsets = [0, 80], sizes = [16, 8], strides = [1, 1]} : vector<16x96xf32> to vector<16x8xf32>
    %64 = vector.shape_cast %63 : vector<16x8xf32> to vector<2x8x8xf32>
    %65 = arith.truncf %64 : vector<2x8x8xf32> to vector<2x8x8xbf16>
    "tpu.trace_start"() <{level = 10 : i32, message = "bqd,bkd->bqk"}> : () -> ()
    %cst_17 = arith.constant dense<0.000000e+00> : vector<2x8x8xf32>
    %66 = tpu.matmul %59, %62, %cst_17 {dimension_numbers = #tpu.dot_dimension_numbers<[2], [2], [1], [1], [0, 0, 0, 1, 1, 1], [0], [0]>} : vector<2x8x8xbf16>, vector<2x8x8xbf16>, vector<2x8x8xf32> -> vector<2x8x8xf32>
    "tpu.trace_stop"() : () -> ()
    %cst_18 = arith.constant dense<0xFF800000> : vector<2x8xf32>
    %67 = vector.multi_reduction <maximumf>, %66, %cst_18 [2] : vector<2x8x8xf32> to vector<2x8xf32>
    %68 = vector.shape_cast %67 : vector<2x8xf32> to vector<2x8x1xf32>
    %69 = vector.broadcast %68 : vector<2x8x1xf32> to vector<2x8x8xf32>
    %70 = arith.subf %66, %69 : vector<2x8x8xf32>
    %71 = math.exp %70 : vector<2x8x8xf32>
    %cst_19 = arith.constant dense<0.000000e+00> : vector<2x8xf32>
    %72 = vector.multi_reduction <add>, %71, %cst_19 [2] : vector<2x8x8xf32> to vector<2x8xf32>
    %73 = vector.shape_cast %72 : vector<2x8xf32> to vector<2x8x1xf32>
    %74 = vector.broadcast %73 : vector<2x8x1xf32> to vector<2x8x8xf32>
    %75 = arith.divf %71, %74 : vector<2x8x8xf32>
    %76 = arith.truncf %75 : vector<2x8x8xf32> to vector<2x8x8xbf16>
    "tpu.trace_start"() <{level = 10 : i32, message = "bqk,bkd->bqd"}> : () -> ()
    %cst_20 = arith.constant dense<0.000000e+00> : vector<2x8x8xf32>
    %77 = tpu.matmul %76, %65, %cst_20 {dimension_numbers = #tpu.dot_dimension_numbers<[2], [1], [1], [2], [0, 0, 0, 1, 1, 2], [0], [0]>} : vector<2x8x8xbf16>, vector<2x8x8xbf16>, vector<2x8x8xf32> -> vector<2x8x8xf32>
    "tpu.trace_stop"() : () -> ()
    %78 = vector.shape_cast %77 : vector<2x8x8xf32> to vector<16x8xf32>
    %79 = arith.truncf %78 : vector<16x8xf32> to vector<16x8xbf16>
    %c16 = arith.constant 16 : index
    %c0_21 = arith.constant 0 : index
    %80 = vector.load %arg3[%c16, %c0_21] : memref<32x32xbf16, #tpu.memory_space<vmem>>, vector<8x32xbf16>
    %cst_22 = arith.constant dense<0.000000e+00> : vector<16x32xf32>
    %81 = tpu.matmul %79, %80, %cst_22 {dimension_numbers = #tpu.dot_dimension_numbers<[1], [0], [0], [1], [0, 0, 1, 1], [], []>} : vector<16x8xbf16>, vector<8x32xbf16>, vector<16x32xf32> -> vector<16x32xf32>
    %82 = arith.addf %56, %81 : vector<16x32xf32>
    %83 = vector.extract_strided_slice %3 {offsets = [0, 24], sizes = [16, 8], strides = [1, 1]} : vector<16x96xf32> to vector<16x8xf32>
    %84 = vector.shape_cast %83 : vector<16x8xf32> to vector<2x8x8xf32>
    %85 = arith.truncf %84 : vector<2x8x8xf32> to vector<2x8x8xbf16>
    %86 = vector.extract_strided_slice %3 {offsets = [0, 56], sizes = [16, 8], strides = [1, 1]} : vector<16x96xf32> to vector<16x8xf32>
    %87 = vector.shape_cast %86 : vector<16x8xf32> to vector<2x8x8xf32>
    %88 = arith.truncf %87 : vector<2x8x8xf32> to vector<2x8x8xbf16>
    %89 = vector.extract_strided_slice %3 {offsets = [0, 88], sizes = [16, 8], strides = [1, 1]} : vector<16x96xf32> to vector<16x8xf32>
    %90 = vector.shape_cast %89 : vector<16x8xf32> to vector<2x8x8xf32>
    %91 = arith.truncf %90 : vector<2x8x8xf32> to vector<2x8x8xbf16>
    "tpu.trace_start"() <{level = 10 : i32, message = "bqd,bkd->bqk"}> : () -> ()
    %cst_23 = arith.constant dense<0.000000e+00> : vector<2x8x8xf32>
    %92 = tpu.matmul %85, %88, %cst_23 {dimension_numbers = #tpu.dot_dimension_numbers<[2], [2], [1], [1], [0, 0, 0, 1, 1, 1], [0], [0]>} : vector<2x8x8xbf16>, vector<2x8x8xbf16>, vector<2x8x8xf32> -> vector<2x8x8xf32>
    "tpu.trace_stop"() : () -> ()
    %cst_24 = arith.constant dense<0xFF800000> : vector<2x8xf32>
    %93 = vector.multi_reduction <maximumf>, %92, %cst_24 [2] : vector<2x8x8xf32> to vector<2x8xf32>
    %94 = vector.shape_cast %93 : vector<2x8xf32> to vector<2x8x1xf32>
    %95 = vector.broadcast %94 : vector<2x8x1xf32> to vector<2x8x8xf32>
    %96 = arith.subf %92, %95 : vector<2x8x8xf32>
    %97 = math.exp %96 : vector<2x8x8xf32>
    %cst_25 = arith.constant dense<0.000000e+00> : vector<2x8xf32>
    %98 = vector.multi_reduction <add>, %97, %cst_25 [2] : vector<2x8x8xf32> to vector<2x8xf32>
    %99 = vector.shape_cast %98 : vector<2x8xf32> to vector<2x8x1xf32>
    %100 = vector.broadcast %99 : vector<2x8x1xf32> to vector<2x8x8xf32>
    %101 = arith.divf %97, %100 : vector<2x8x8xf32>
    %102 = arith.truncf %101 : vector<2x8x8xf32> to vector<2x8x8xbf16>
    "tpu.trace_start"() <{level = 10 : i32, message = "bqk,bkd->bqd"}> : () -> ()
    %cst_26 = arith.constant dense<0.000000e+00> : vector<2x8x8xf32>
    %103 = tpu.matmul %102, %91, %cst_26 {dimension_numbers = #tpu.dot_dimension_numbers<[2], [1], [1], [2], [0, 0, 0, 1, 1, 2], [0], [0]>} : vector<2x8x8xbf16>, vector<2x8x8xbf16>, vector<2x8x8xf32> -> vector<2x8x8xf32>
    "tpu.trace_stop"() : () -> ()
    %104 = vector.shape_cast %103 : vector<2x8x8xf32> to vector<16x8xf32>
    %105 = arith.truncf %104 : vector<16x8xf32> to vector<16x8xbf16>
    %c24 = arith.constant 24 : index
    %c0_27 = arith.constant 0 : index
    %106 = vector.load %arg3[%c24, %c0_27] : memref<32x32xbf16, #tpu.memory_space<vmem>>, vector<8x32xbf16>
    %cst_28 = arith.constant dense<0.000000e+00> : vector<16x32xf32>
    %107 = tpu.matmul %105, %106, %cst_28 {dimension_numbers = #tpu.dot_dimension_numbers<[1], [0], [0], [1], [0, 0, 1, 1], [], []>} : vector<16x8xbf16>, vector<8x32xbf16>, vector<16x32xf32> -> vector<16x32xf32>
    %108 = arith.addf %82, %107 : vector<16x32xf32>
    %c0_29 = arith.constant 0 : index
    %c0_30 = arith.constant 0 : index
    %109 = vector.load %arg4[%c0_29, %c0_30] : memref<70x32xf32, #tpu.memory_space<vmem>>, vector<70x32xf32>
    %110 = vector.extract_strided_slice %109 {offsets = [0, 0], sizes = [32, 32], strides = [1, 1]} : vector<70x32xf32> to vector<32x32xf32>
    %111 = arith.truncf %110 : vector<32x32xf32> to vector<32x32xbf16>
    %112 = vector.extract_strided_slice %109 {offsets = [32, 0], sizes = [32, 32], strides = [1, 1]} : vector<70x32xf32> to vector<32x32xf32>
    %113 = arith.truncf %112 : vector<32x32xf32> to vector<32x32xbf16>
    %114 = vector.extract_strided_slice %109 {offsets = [64, 0], sizes = [1, 32], strides = [1, 1]} : vector<70x32xf32> to vector<1x32xf32>
    %115 = vector.extract_strided_slice %109 {offsets = [65, 0], sizes = [1, 32], strides = [1, 1]} : vector<70x32xf32> to vector<1x32xf32>
    %116 = vector.extract_strided_slice %109 {offsets = [66, 0], sizes = [1, 32], strides = [1, 1]} : vector<70x32xf32> to vector<1x32xf32>
    %117 = vector.extract_strided_slice %109 {offsets = [67, 0], sizes = [1, 32], strides = [1, 1]} : vector<70x32xf32> to vector<1x32xf32>
    %118 = vector.extract_strided_slice %109 {offsets = [68, 0], sizes = [1, 32], strides = [1, 1]} : vector<70x32xf32> to vector<1x32xf32>
    %119 = vector.extract_strided_slice %109 {offsets = [69, 0], sizes = [1, 32], strides = [1, 1]} : vector<70x32xf32> to vector<1x32xf32>
    %120 = arith.addf %0, %108 : vector<16x32xf32>
    %cst_31 = arith.constant dense<0.000000e+00> : vector<16xf32>
    %121 = vector.multi_reduction <add>, %120, %cst_31 [1] : vector<16x32xf32> to vector<16xf32>
    %122 = vector.shape_cast %121 : vector<16xf32> to vector<16x1xf32>
    %cst_32 = arith.constant 3.200000e+01 : f32
    %123 = vector.broadcast %cst_32 : f32 to vector<16x1xf32>
    %124 = arith.divf %122, %123 : vector<16x1xf32>
    %125 = vector.broadcast %124 : vector<16x1xf32> to vector<16x32xf32>
    %126 = arith.subf %120, %125 : vector<16x32xf32>
    %127 = arith.mulf %126, %126 : vector<16x32xf32>
    %cst_33 = arith.constant dense<0.000000e+00> : vector<16xf32>
    %128 = vector.multi_reduction <add>, %127, %cst_33 [1] : vector<16x32xf32> to vector<16xf32>
    %129 = vector.shape_cast %128 : vector<16xf32> to vector<16x1xf32>
    %cst_34 = arith.constant 3.200000e+01 : f32
    %130 = vector.broadcast %cst_34 : f32 to vector<16x1xf32>
    %131 = arith.divf %129, %130 : vector<16x1xf32>
    %132 = vector.broadcast %124 : vector<16x1xf32> to vector<16x32xf32>
    %133 = arith.subf %120, %132 : vector<16x32xf32>
    %cst_35 = arith.constant 9.99999974E-6 : f32
    %134 = vector.broadcast %cst_35 : f32 to vector<16x1xf32>
    %135 = arith.addf %131, %134 : vector<16x1xf32>
    %136 = math.rsqrt %135 : vector<16x1xf32>
    %137 = vector.broadcast %136 : vector<16x1xf32> to vector<16x32xf32>
    %138 = arith.mulf %133, %137 : vector<16x32xf32>
    %139 = vector.broadcast %116 : vector<1x32xf32> to vector<16x32xf32>
    %140 = arith.mulf %138, %139 : vector<16x32xf32>
    %141 = vector.broadcast %117 : vector<1x32xf32> to vector<16x32xf32>
    %142 = arith.addf %140, %141 : vector<16x32xf32>
    %143 = arith.truncf %142 : vector<16x32xf32> to vector<16x32xbf16>
    %cst_36 = arith.constant dense<0.000000e+00> : vector<16x32xf32>
    %144 = tpu.matmul %143, %111, %cst_36 {dimension_numbers = #tpu.dot_dimension_numbers<[1], [0], [0], [1], [0, 0, 1, 1], [], []>} : vector<16x32xbf16>, vector<32x32xbf16>, vector<16x32xf32> -> vector<16x32xf32>
    %145 = vector.broadcast %114 : vector<1x32xf32> to vector<16x32xf32>
    %146 = arith.addf %144, %145 : vector<16x32xf32>
    %cst_37 = arith.constant 0.000000e+00 : f32
    %147 = vector.broadcast %cst_37 : f32 to vector<16x32xf32>
    %148 = arith.maximumf %146, %147 : vector<16x32xf32>
    %149 = arith.truncf %148 : vector<16x32xf32> to vector<16x32xbf16>
    %cst_38 = arith.constant dense<0.000000e+00> : vector<16x32xf32>
    %150 = tpu.matmul %149, %113, %cst_38 {dimension_numbers = #tpu.dot_dimension_numbers<[1], [0], [0], [1], [0, 0, 1, 1], [], []>} : vector<16x32xbf16>, vector<32x32xbf16>, vector<16x32xf32> -> vector<16x32xf32>
    %151 = vector.broadcast %115 : vector<1x32xf32> to vector<16x32xf32>
    %152 = arith.addf %150, %151 : vector<16x32xf32>
    %153 = arith.addf %142, %152 : vector<16x32xf32>
    %cst_39 = arith.constant dense<0.000000e+00> : vector<16xf32>
    %154 = vector.multi_reduction <add>, %153, %cst_39 [1] : vector<16x32xf32> to vector<16xf32>
    %155 = vector.shape_cast %154 : vector<16xf32> to vector<16x1xf32>
    %cst_40 = arith.constant 3.200000e+01 : f32
    %156 = vector.broadcast %cst_40 : f32 to vector<16x1xf32>
    %157 = arith.divf %155, %156 : vector<16x1xf32>
    %158 = vector.broadcast %157 : vector<16x1xf32> to vector<16x32xf32>
    %159 = arith.subf %153, %158 : vector<16x32xf32>
    %160 = arith.mulf %159, %159 : vector<16x32xf32>
    %cst_41 = arith.constant dense<0.000000e+00> : vector<16xf32>
    %161 = vector.multi_reduction <add>, %160, %cst_41 [1] : vector<16x32xf32> to vector<16xf32>
    %162 = vector.shape_cast %161 : vector<16xf32> to vector<16x1xf32>
    %cst_42 = arith.constant 3.200000e+01 : f32
    %163 = vector.broadcast %cst_42 : f32 to vector<16x1xf32>
    %164 = arith.divf %162, %163 : vector<16x1xf32>
    %165 = vector.broadcast %157 : vector<16x1xf32> to vector<16x32xf32>
    %166 = arith.subf %153, %165 : vector<16x32xf32>
    %cst_43 = arith.constant 9.99999974E-6 : f32
    %167 = vector.broadcast %cst_43 : f32 to vector<16x1xf32>
    %168 = arith.addf %164, %167 : vector<16x1xf32>
    %169 = math.rsqrt %168 : vector<16x1xf32>
    %170 = vector.broadcast %169 : vector<16x1xf32> to vector<16x32xf32>
    %171 = arith.mulf %166, %170 : vector<16x32xf32>
    %172 = vector.broadcast %118 : vector<1x32xf32> to vector<16x32xf32>
    %173 = arith.mulf %171, %172 : vector<16x32xf32>
    %174 = vector.broadcast %119 : vector<1x32xf32> to vector<16x32xf32>
    %175 = arith.addf %173, %174 : vector<16x32xf32>
    %c0_44 = arith.constant 0 : index
    %c0_45 = arith.constant 0 : index
    %176 = vector.load %arg5[%c0_44, %c0_45] : memref<16x32xf32, #tpu.memory_space<vmem>>, vector<16x32xf32>
    tpu.vector_store %arg5[%c0_44, %c0_45], %175 {strides = array<i32>} : memref<16x32xf32, #tpu.memory_space<vmem>>, vector<16x32xf32>,
    return
  }
  func.func @transform_0(%arg0: i32) -> (i32, i32) {
    %c0_i32 = arith.constant 0 : i32
    %c0_i32_0 = arith.constant 0 : i32
    return %arg0, %c0_i32 : i32, i32
  }
  func.func @transform_1(%arg0: i32) -> (i32, i32) {
    %c0_i32 = arith.constant 0 : i32
    %c0_i32_0 = arith.constant 0 : i32
    %c0_i32_1 = arith.constant 0 : i32
    return %c0_i32, %c0_i32_0 : i32, i32
  }
  func.func @transform_2(%arg0: i32) -> (i32, i32) {
    %c0_i32 = arith.constant 0 : i32
    %c0_i32_0 = arith.constant 0 : i32
    %c0_i32_1 = arith.constant 0 : i32
    return %c0_i32, %c0_i32_0 : i32, i32
  }
  func.func @transform_3(%arg0: i32) -> (i32, i32) {
    %c0_i32 = arith.constant 0 : i32
    %c0_i32_0 = arith.constant 0 : i32
    %c0_i32_1 = arith.constant 0 : i32
    return %c0_i32, %c0_i32_0 : i32, i32
  }
  func.func @transform_4(%arg0: i32) -> (i32, i32) {
    %c0_i32 = arith.constant 0 : i32
    %c0_i32_0 = arith.constant 0 : i32
    return %arg0, %c0_i32 : i32, i32
  }
}

</mosaic_0001>

<llo_original>
// kernel: tpu_custom_call.1
$region0: #{tpu_custom_call.1}
  #allocation0 [shape = 'u32[]', space=smem, size = 0x4, offset = 0x4, fixed_abs, tag = 'smem constant byte address 0x4 - core index']
  #allocation1 [shape = 'u32[144,128]{1,0:T(1,128)}', space=vmem, size = 0x12000, scoped, tag = 'internal scratch']
  %s0 = inlined_call_operand.vmem [shape: f32[16,32], index: 0, kind: input, shape index: {}]
  %s1 = inlined_call_operand.vmem [shape: bf16[32,96], index: 1, kind: input, shape index: {}]
  %s2 = inlined_call_operand.vmem [shape: bf16[32,32], index: 2, kind: input, shape index: {}]
  %s3 = inlined_call_operand.vmem [shape: f32[70,32], index: 3, kind: input, shape index: {}]
  %s4 = inlined_call_operand.hbm [shape: f32[16,32], index: 4, kind: output, shape index: {}]
  %s5 = sld [smem:[#allocation0]]
  $region26: #{tpu_custom_call.1} parent=0
    _
  %s7 = ssub.s32 1, %s5
  %s8 = scalar_select 0, %s7, %s5
  $region1: #{tpu_custom_call.1} parent=0
    #allocation2 [shape = 'u8[8192]{0}', space=vmem, size = 0x2000, scoped, tag = 'output window, operand 0, single buffered']
    #allocation3 [shape = 's32[1]{0}', space=sflag, size = 0x4, scoped, tag = 'scoped memory for tpu_custom_call.1']
    %9 = vsyncpa [#allocation3], 0
    // Predicated region
    $region2: #{tpu_custom_call.1} parent=1 // pred_check
      _
    $region3: #{tpu_custom_call.1} parent=1 // pred_check_branch
      %11 = sbr.rel (0) target = $region5
    $region4: #{tpu_custom_call.1} parent=1 // pred_region
      _
    $region5: #{tpu_custom_call.1} parent=1 // pred_fallthru
      _
    // Predicated region
    $region6: #{tpu_custom_call.1} parent=1 // pred_check
      _
    $region7: #{tpu_custom_call.1} parent=1 // pred_check_branch
      %13 = sbr.rel (0) target = $region9
    $region8: #{tpu_custom_call.1} parent=1 // pred_region
      _
    $region9: #{tpu_custom_call.1} parent=1 // pred_fallthru
      _
    // Predicated region
    $region10: #{tpu_custom_call.1} parent=1 // pred_check
      _
    $region11: #{tpu_custom_call.1} parent=1 // pred_check_branch
      %15 = sbr.rel (0) target = $region13
    $region12: #{tpu_custom_call.1} parent=1 // pred_region
      _
    $region13: #{tpu_custom_call.1} parent=1 // pred_fallthru
      _
    // Predicated region
    $region14: #{tpu_custom_call.1} parent=1 // pred_check
      _
    $region15: #{tpu_custom_call.1} parent=1 // pred_check_branch
      %17 = sbr.rel (0) target = $region17
    $region16: #{tpu_custom_call.1} parent=1 // pred_region
      _
    $region17: #{tpu_custom_call.1} parent=1 // pred_fallthru
      _
    %v19 = vld [vmem:[%s0] sm:$0xff]
    %v20 = vld [vmem:[%s0 + $0x8] sm:$0xff]
    %v21 = vpack.c.bf16 %v20, %v19
    %v22 = vld [vmem:[%s1] sm:$0xf]
    %v23 = vld [vmem:[%s1 + $0x4] sm:$0xf]
    %v24 = vld [vmem:[%s1 + $0x8] sm:$0xf]
    %v25 = vld [vmem:[%s1 + $0xc] sm:$0xf]
    %v30 = vunpack.c.l.b16 %v22
    %v31 = vunpack.c.l.b16 %v23
    %v32 = vunpack.c.l.b16 %v24
    %v33 = vunpack.c.l.b16 %v25
    %v34 = vpack.c.b16 %v31, %v30
    %v35 = vpack.c.b16 %v33, %v32
    %vm38 = vcmask 261120
    %v40 = vsel %vm38, %v21, 0
    %42 = vmatprep.subr.bf16.mxu0 0
    %43 = vmatpush1.bf16.msra.mxu0 %v34
    %44 = vmatprep.subr.bf16.mxu0 0
    %45 = vmatpush1.bf16.msra.mxu0 %v35
    %46 = vmatprep.subr.bf16.mxu0 0
    %47 = vmatpush1.bf16.msra.mxu0 0
    %48 = vmatprep.subr.bf16.mxu0 0
    %49 = vmatpush1.bf16.msra.mxu0 0
    %50 = vmatprep.subr.bf16.mxu0 0
    %51 = vmatpush1.bf16.msra.mxu0 0
    %52 = vmatprep.subr.bf16.mxu0 0
    %53 = vmatpush1.bf16.msra.mxu0 0
    %54 = vmatprep.subr.bf16.mxu0 0
    %55 = vmatpush1.bf16.msra.mxu0 0
    %56 = vmatprep.subr.bf16.mxu0 0
    %57 = vmatpush1.bf16.msra.mxu0 0
    %58 = vmatprep.subr.bf16.mxu0 0
    %59 = vmatpush1.bf16.msra.mxu0 0
    %60 = vmatprep.subr.bf16.mxu0 0
    %61 = vmatpush1.bf16.msra.mxu0 0
    %62 = vmatprep.subr.bf16.mxu0 0
    %63 = vmatpush1.bf16.msra.mxu0 0
    %64 = vmatprep.subr.bf16.mxu0 0
    %65 = vmatpush1.bf16.msra.mxu0 0
    %66 = vmatprep.subr.bf16.mxu0 0
    %67 = vmatpush1.bf16.msra.mxu0 0
    %68 = vmatprep.subr.bf16.mxu0 0
    %69 = vmatpush1.bf16.msra.mxu0 0
    %70 = vmatprep.subr.bf16.mxu0 0
    %71 = vmatpush1.bf16.msra.mxu0 0
    %72 = vmatprep.subr.bf16.mxu0 0
    %73 = vmatpush1.bf16.msra.mxu0 0
    %74 = vmatprep.mubr.bf16.mxu0 0
    %75 = vmatmul.mubr.bf16.gmra.mrb[0].mxu0 %v40
    %v76 = vpop.f32.mrb[0].mxu0
    %v77 = vadd.f32 0.0, %v76
    %v78 = vpop.f32.mrb[0].mxu0
    %v79 = vpop.f32.mrb[0].mxu0
    %v80 = vadd.f32 0.0, %v79
    %v81 = vpop.f32.mrb[0].mxu0
    %82 = vdwg.mxu0
    %v83 = vpack.c.bf16 %v77, %v77
    %v84 = vpack.c.bf16 %v80, %v80
    %86 = vrot.lane.b32.xlu0 %v83, 96
    %v87 = vpop.permute.xlu0 %86
    %vm88 = vcmask 64512
    %v90 = vsel %vm88, %v83, 0
    %v93 = vsel %vm88, %v87, 0
    %95 = vmatprep.subr.bf16.mxu0 0
    %96 = vmatpush1.bf16.xpose.msra.mxu0 %v93
    %97 = vmatprep.subr.bf16.mxu0 0
    %98 = vmatpush1.bf16.xpose.msra.mxu0 0
    %99 = vmatprep.subr.bf16.mxu0 0
    %100 = vmatpush1.bf16.xpose.msra.mxu0 0
    %101 = vmatprep.subr.bf16.mxu0 0
    %102 = vmatpush1.bf16.xpose.msra.mxu0 0
    %103 = vmatprep.subr.bf16.mxu0 0
    %104 = vmatpush1.bf16.xpose.msra.mxu0 0
    %105 = vmatprep.subr.bf16.mxu0 0
    %106 = vmatpush1.bf16.xpose.msra.mxu0 0
    %107 = vmatprep.subr.bf16.mxu0 0
    %108 = vmatpush1.bf16.xpose.msra.mxu0 0
    %109 = vmatprep.subr.bf16.mxu0 0
    %110 = vmatpush1.bf16.xpose.msra.mxu0 0
    %111 = vmatprep.subr.bf16.mxu0 0
    %112 = vmatpush1.bf16.xpose.msra.mxu0 0
    %113 = vmatprep.subr.bf16.mxu0 0
    %114 = vmatpush1.bf16.xpose.msra.mxu0 0
    %115 = vmatprep.subr.bf16.mxu0 0
    %116 = vmatpush1.bf16.xpose.msra.mxu0 0
    %117 = vmatprep.subr.bf16.mxu0 0
    %118 = vmatpush1.bf16.xpose.msra.mxu0 0
    %119 = vmatprep.subr.bf16.mxu0 0
    %120 = vmatpush1.bf16.xpose.msra.mxu0 0
    %121 = vmatprep.subr.bf16.mxu0 0
    %122 = vmatpush1.bf16.xpose.msra.mxu0 0
    %123 = vmatprep.subr.bf16.mxu0 0
    %124 = vmatpush1.bf16.xpose.msra.mxu0 0
    %125 = vmatprep.subr.bf16.mxu0 0
    %126 = vmatpush1.bf16.xpose.msra.mxu0 0
    %127 = vmatprep.mubr.bf16.mxu0 0
    %128 = vmatmul.mubr.bf16.gmra.mrb[0].mxu0 %v90
    %v129 = vpop.f32.mrb[0].mxu0
    %v130 = vadd.f32 0.0, %v129
    %v131 = vpop.f32.mrb[0].mxu0
    %v132 = vpop.f32.mrb[0].mxu0
    %v133 = vpop.f32.mrb[0].mxu0
    %134 = vdwg.mxu0
    %136 = vrot.lane.b32.xlu0 %v84, 96
    %v137 = vpop.permute.xlu0 %136
    %v139 = vsel %vm88, %v84, 0
    %v142 = vsel %vm88, %v137, 0
    %144 = vmatprep.subr.bf16.mxu0 0
    %145 = vmatpush1.bf16.xpose.msra.mxu0 %v142
    %146 = vmatprep.subr.bf16.mxu0 0
    %147 = vmatpush1.bf16.xpose.msra.mxu0 0
    %148 = vmatprep.subr.bf16.mxu0 0
    %149 = vmatpush1.bf16.xpose.msra.mxu0 0
    %150 = vmatprep.subr.bf16.mxu0 0
    %151 = vmatpush1.bf16.xpose.msra.mxu0 0
    %152 = vmatprep.subr.bf16.mxu0 0
    %153 = vmatpush1.bf16.xpose.msra.mxu0 0
    %154 = vmatprep.subr.bf16.mxu0 0
    %155 = vmatpush1.bf16.xpose.msra.mxu0 0
    %156 = vmatprep.subr.bf16.mxu0 0
    %157 = vmatpush1.bf16.xpose.msra.mxu0 0
    %158 = vmatprep.subr.bf16.mxu0 0
    %159 = vmatpush1.bf16.xpose.msra.mxu0 0
    %160 = vmatprep.subr.bf16.mxu0 0
    %161 = vmatpush1.bf16.xpose.msra.mxu0 0
    %162 = vmatprep.subr.bf16.mxu0 0
    %163 = vmatpush1.bf16.xpose.msra.mxu0 0
    %164 = vmatprep.subr.bf16.mxu0 0
    %165 = vmatpush1.bf16.xpose.msra.mxu0 0
    %166 = vmatprep.subr.bf16.mxu0 0
    %167 = vmatpush1.bf16.xpose.msra.mxu0 0
    %168 = vmatprep.subr.bf16.mxu0 0
    %169 = vmatpush1.bf16.xpose.msra.mxu0 0
    %170 = vmatprep.subr.bf16.mxu0 0
    %171 = vmatpush1.bf16.xpose.msra.mxu0 0
    %172 = vmatprep.subr.bf16.mxu0 0
    %173 = vmatpush1.bf16.xpose.msra.mxu0 0
    %174 = vmatprep.subr.bf16.mxu0 0
    %175 = vmatpush1.bf16.xpose.msra.mxu0 0
    %176 = vmatprep.mubr.bf16.mxu0 0
    %177 = vmatmul.mubr.bf16.gmra.mrb[0].mxu0 %v139
    %v178 = vpop.f32.mrb[0].mxu0
    %v179 = vadd.f32 0.0, %v178
    %v180 = vpop.f32.mrb[0].mxu0
    %v181 = vpop.f32.mrb[0].mxu0
    %v182 = vpop.f32.mrb[0].mxu0
    %183 = vdwg.mxu0
    %v184 = vsel %vm88, %v130, -inf
    %185 = vmax.xlane.f32.xlu0 %v184
    %v186 = vpop.xlane.xlu0 %185
    %v187 = vsel %vm88, %v179, -inf
    %188 = vmax.xlane.f32.xlu0 %v187
    %v189 = vpop.xlane.xlu0 %188
    %v190 = vsub.f32 %v130, %v186
    %v191 = vsub.f32 %v179, %v189
    %v192 = vmul.f32 %v190, 1.442695
    %v193 = vpow.pop %v192
    %v194 = vmul.f32 %v191, 1.442695
    %v195 = vpow.pop %v194
    %v196 = vsel %vm88, %v193, 0.0
    %197 = vadd.xlane.f32.xlu0 %v196
    %v198 = vpop.xlane.xlu0 %197
    %v199 = vsel %vm88, %v195, 0.0
    %200 = vadd.xlane.f32.xlu0 %v199
    %v201 = vpop.xlane.xlu0 %200
    %v202 = vrcp.pop %v198
    %v203 = vmul.f32 %v193, %v202
    %v204 = vrcp.pop %v201
    %v205 = vmul.f32 %v195, %v204
    %v206 = vpack.c.bf16 %v203, %v203
    %v207 = vpack.c.bf16 %v205, %v205
    %208 = vrot.lane.b32.xlu0 %v83, 64
    %v209 = vpop.permute.xlu0 %208
    %v211 = vsel %vm88, %v206, 0
    %vm213 = vcmask 1043456
    %v215 = vsel %vm213, %v209, 0
    %217 = vmatprep.subr.bf16.mxu0 0
    %218 = vmatpush1.bf16.msra.mxu0 %v215
    %219 = vmatprep.subr.bf16.mxu0 0
    %220 = vmatpush1.bf16.msra.mxu0 0
    %221 = vmatprep.subr.bf16.mxu0 0
    %222 = vmatpush1.bf16.msra.mxu0 0
    %223 = vmatprep.subr.bf16.mxu0 0
    %224 = vmatpush1.bf16.msra.mxu0 0
    %225 = vmatprep.subr.bf16.mxu0 0
    %226 = vmatpush1.bf16.msra.mxu0 0
    %227 = vmatprep.subr.bf16.mxu0 0
    %228 = vmatpush1.bf16.msra.mxu0 0
    %229 = vmatprep.subr.bf16.mxu0 0
    %230 = vmatpush1.bf16.msra.mxu0 0
    %231 = vmatprep.subr.bf16.mxu0 0
    %232 = vmatpush1.bf16.msra.mxu0 0
    %233 = vmatprep.subr.bf16.mxu0 0
    %234 = vmatpush1.bf16.msra.mxu0 0
    %235 = vmatprep.subr.bf16.mxu0 0
    %236 = vmatpush1.bf16.msra.mxu0 0
    %237 = vmatprep.subr.bf16.mxu0 0
    %238 = vmatpush1.bf16.msra.mxu0 0
    %239 = vmatprep.subr.bf16.mxu0 0
    %240 = vmatpush1.bf16.msra.mxu0 0
    %241 = vmatprep.subr.bf16.mxu0 0
    %242 = vmatpush1.bf16.msra.mxu0 0
    %243 = vmatprep.subr.bf16.mxu0 0
    %244 = vmatpush1.bf16.msra.mxu0 0
    %245 = vmatprep.subr.bf16.mxu0 0
    %246 = vmatpush1.bf16.msra.mxu0 0
    %247 = vmatprep.subr.bf16.mxu0 0
    %248 = vmatpush1.bf16.msra.mxu0 0
    %249 = vmatprep.mubr.bf16.mxu0 0
    %250 = vmatmul.mubr.bf16.gmra.mrb[0].mxu0 %v211
    %v251 = vpop.f32.mrb[0].mxu0
    %v252 = vadd.f32 0.0, %v251
    %v253 = vpop.f32.mrb[0].mxu0
    %v254 = vpop.f32.mrb[0].mxu0
    %v255 = vpop.f32.mrb[0].mxu0
    %256 = vdwg.mxu0
    %257 = vrot.lane.b32.xlu0 %v84, 64
    %v258 = vpop.permute.xlu0 %257
    %v260 = vsel %vm88, %v207, 0
    %v263 = vsel %vm213, %v258, 0
    %265 = vmatprep.subr.bf16.mxu0 0
    %266 = vmatpush1.bf16.msra.mxu0 %v263
    %267 = vmatprep.subr.bf16.mxu0 0
    %268 = vmatpush1.bf16.msra.mxu0 0
    %269 = vmatprep.subr.bf16.mxu0 0
    %270 = vmatpush1.bf16.msra.mxu0 0
    %271 = vmatprep.subr.bf16.mxu0 0
    %272 = vmatpush1.bf16.msra.mxu0 0
    %273 = vmatprep.subr.bf16.mxu0 0
    %274 = vmatpush1.bf16.msra.mxu0 0
    %275 = vmatprep.subr.bf16.mxu0 0
    %276 = vmatpush1.bf16.msra.mxu0 0
    %277 = vmatprep.subr.bf16.mxu0 0
    %278 = vmatpush1.bf16.msra.mxu0 0
    %279 = vmatprep.subr.bf16.mxu0 0
    %280 = vmatpush1.bf16.msra.mxu0 0
    %281 = vmatprep.subr.bf16.mxu0 0
    %282 = vmatpush1.bf16.msra.mxu0 0
    %283 = vmatprep.subr.bf16.mxu0 0
    %284 = vmatpush1.bf16.msra.mxu0 0
    %285 = vmatprep.subr.bf16.mxu0 0
    %286 = vmatpush1.bf16.msra.mxu0 0
    %287 = vmatprep.subr.bf16.mxu0 0
    %288 = vmatpush1.bf16.msra.mxu0 0
    %289 = vmatprep.subr.bf16.mxu0 0
    %290 = vmatpush1.bf16.msra.mxu0 0
    %291 = vmatprep.subr.bf16.mxu0 0
    %292 = vmatpush1.bf16.msra.mxu0 0
    %293 = vmatprep.subr.bf16.mxu0 0
    %294 = vmatpush1.bf16.msra.mxu0 0
    %295 = vmatprep.subr.bf16.mxu0 0
    %296 = vmatpush1.bf16.msra.mxu0 0
    %297 = vmatprep.mubr.bf16.mxu0 0
    %298 = vmatmul.mubr.bf16.gmra.mrb[0].mxu0 %v260
    %v299 = vpop.f32.mrb[0].mxu0
    %v300 = vadd.f32 0.0, %v299
    %v301 = vpop.f32.mrb[0].mxu0
    %v302 = vpop.f32.mrb[0].mxu0
    %v303 = vpop.f32.mrb[0].mxu0
    %304 = vdwg.mxu0
    %v305 = vpack.c.bf16 %v300, %v252
    %v306 = vld [vmem:[%s2] sm:$0xf]
    %307 = vrot.lane.b32.xlu0 %v83, 120
    %v308 = vpop.permute.xlu0 %307
    %309 = vrot.lane.b32.xlu0 %v83, 88
    %v310 = vpop.permute.xlu0 %309
    %v312 = vsel %vm88, %v308, 0
    %v315 = vsel %vm88, %v310, 0
    %317 = vmatprep.subr.bf16.mxu0 0
    %318 = vmatpush1.bf16.xpose.msra.mxu0 %v315
    %319 = vmatprep.subr.bf16.mxu0 0
    %320 = vmatpush1.bf16.xpose.msra.mxu0 0
    %321 = vmatprep.subr.bf16.mxu0 0
    %322 = vmatpush1.bf16.xpose.msra.mxu0 0
    %323 = vmatprep.subr.bf16.mxu0 0
    %324 = vmatpush1.bf16.xpose.msra.mxu0 0
    %325 = vmatprep.subr.bf16.mxu0 0
    %326 = vmatpush1.bf16.xpose.msra.mxu0 0
    %327 = vmatprep.subr.bf16.mxu0 0
    %328 = vmatpush1.bf16.xpose.msra.mxu0 0
    %329 = vmatprep.subr.bf16.mxu0 0
    %330 = vmatpush1.bf16.xpose.msra.mxu0 0
    %331 = vmatprep.subr.bf16.mxu0 0
    %332 = vmatpush1.bf16.xpose.msra.mxu0 0
    %333 = vmatprep.subr.bf16.mxu0 0
    %334 = vmatpush1.bf16.xpose.msra.mxu0 0
    %335 = vmatprep.subr.bf16.mxu0 0
    %336 = vmatpush1.bf16.xpose.msra.mxu0 0
    %337 = vmatprep.subr.bf16.mxu0 0
    %338 = vmatpush1.bf16.xpose.msra.mxu0 0
    %339 = vmatprep.subr.bf16.mxu0 0
    %340 = vmatpush1.bf16.xpose.msra.mxu0 0
    %341 = vmatprep.subr.bf16.mxu0 0
    %342 = vmatpush1.bf16.xpose.msra.mxu0 0
    %343 = vmatprep.subr.bf16.mxu0 0
    %344 = vmatpush1.bf16.xpose.msra.mxu0 0
    %345 = vmatprep.subr.bf16.mxu0 0
    %346 = vmatpush1.bf16.xpose.msra.mxu0 0
    %347 = vmatprep.subr.bf16.mxu0 0
    %348 = vmatpush1.bf16.xpose.msra.mxu0 0
    %349 = vmatprep.mubr.bf16.mxu0 0
    %350 = vmatmul.mubr.bf16.gmra.mrb[0].mxu0 %v312
    %v351 = vpop.f32.mrb[0].mxu0
    %v352 = vadd.f32 0.0, %v351
    %v353 = vpop.f32.mrb[0].mxu0
    %v354 = vpop.f32.mrb[0].mxu0
    %v355 = vpop.f32.mrb[0].mxu0
    %356 = vdwg.mxu0
    %357 = vrot.lane.b32.xlu0 %v84, 120
    %v358 = vpop.permute.xlu0 %357
    %359 = vrot.lane.b32.xlu0 %v84, 88
    %v360 = vpop.permute.xlu0 %359
    %v362 = vsel %vm88, %v358, 0
    %v365 = vsel %vm88, %v360, 0
    %367 = vmatprep.subr.bf16.mxu0 0
    %368 = vmatpush1.bf16.xpose.msra.mxu0 %v365
    %369 = vmatprep.subr.bf16.mxu0 0
    %370 = vmatpush1.bf16.xpose.msra.mxu0 0
    %371 = vmatprep.subr.bf16.mxu0 0
    %372 = vmatpush1.bf16.xpose.msra.mxu0 0
    %373 = vmatprep.subr.bf16.mxu0 0
    %374 = vmatpush1.bf16.xpose.msra.mxu0 0
    %375 = vmatprep.subr.bf16.mxu0 0
    %376 = vmatpush1.bf16.xpose.msra.mxu0 0
    %377 = vmatprep.subr.bf16.mxu0 0
    %378 = vmatpush1.bf16.xpose.msra.mxu0 0
    %379 = vmatprep.subr.bf16.mxu0 0
    %380 = vmatpush1.bf16.xpose.msra.mxu0 0
    %381 = vmatprep.subr.bf16.mxu0 0
    %382 = vmatpush1.bf16.xpose.msra.mxu0 0
    %383 = vmatprep.subr.bf16.mxu0 0
    %384 = vmatpush1.bf16.xpose.msra.mxu0 0
    %385 = vmatprep.subr.bf16.mxu0 0
    %386 = vmatpush1.bf16.xpose.msra.mxu0 0
    %387 = vmatprep.subr.bf16.mxu0 0
    %388 = vmatpush1.bf16.xpose.msra.mxu0 0
    %389 = vmatprep.subr.bf16.mxu0 0
    %390 = vmatpush1.bf16.xpose.msra.mxu0 0
    %391 = vmatprep.subr.bf16.mxu0 0
    %392 = vmatpush1.bf16.xpose.msra.mxu0 0
    %393 = vmatprep.subr.bf16.mxu0 0
    %394 = vmatpush1.bf16.xpose.msra.mxu0 0
    %395 = vmatprep.subr.bf16.mxu0 0
    %396 = vmatpush1.bf16.xpose.msra.mxu0 0
    %397 = vmatprep.subr.bf16.mxu0 0
    %398 = vmatpush1.bf16.xpose.msra.mxu0 0
    %399 = vmatprep.mubr.bf16.mxu0 0
    %400 = vmatmul.mubr.bf16.gmra.mrb[0].mxu0 %v362
    %v401 = vpop.f32.mrb[0].mxu0
    %v402 = vadd.f32 0.0, %v401
    %v403 = vpop.f32.mrb[0].mxu0
    %v404 = vpop.f32.mrb[0].mxu0
    %v405 = vpop.f32.mrb[0].mxu0
    %406 = vdwg.mxu0
    %v407 = vsel %vm88, %v352, -inf
    %408 = vmax.xlane.f32.xlu0 %v407
    %v409 = vpop.xlane.xlu0 %408
    %v410 = vsel %vm88, %v402, -inf
    %411 = vmax.xlane.f32.xlu0 %v410
    %v412 = vpop.xlane.xlu0 %411
    %v413 = vsub.f32 %v352, %v409
    %v414 = vsub.f32 %v402, %v412
    %v415 = vmul.f32 %v413, 1.442695
    %v416 = vpow.pop %v415
    %v417 = vmul.f32 %v414, 1.442695
    %v418 = vpow.pop %v417
    %v419 = vsel %vm88, %v416, 0.0
    %420 = vadd.xlane.f32.xlu0 %v419
    %v421 = vpop.xlane.xlu0 %420
    %v422 = vsel %vm88, %v418, 0.0
    %423 = vadd.xlane.f32.xlu0 %v422
    %v424 = vpop.xlane.xlu0 %423
    %v425 = vrcp.pop %v421
    %v426 = vmul.f32 %v416, %v425
    %v427 = vrcp.pop %v424
    %v428 = vmul.f32 %v418, %v427
    %v429 = vpack.c.bf16 %v426, %v426
    %v430 = vpack.c.bf16 %v428, %v428
    %431 = vrot.lane.b32.xlu0 %v83, 56
    %v432 = vpop.permute.xlu0 %431
    %v434 = vsel %vm88, %v429, 0
    %v437 = vsel %vm213, %v432, 0
    %439 = vmatprep.subr.bf16.mxu0 0
    %440 = vmatpush1.bf16.msra.mxu0 %v437
    %441 = vmatprep.subr.bf16.mxu0 0
    %442 = vmatpush1.bf16.msra.mxu0 0
    %443 = vmatprep.subr.bf16.mxu0 0
    %444 = vmatpush1.bf16.msra.mxu0 0
    %445 = vmatprep.subr.bf16.mxu0 0
    %446 = vmatpush1.bf16.msra.mxu0 0
    %447 = vmatprep.subr.bf16.mxu0 0
    %448 = vmatpush1.bf16.msra.mxu0 0
    %449 = vmatprep.subr.bf16.mxu0 0
    %450 = vmatpush1.bf16.msra.mxu0 0
    %451 = vmatprep.subr.bf16.mxu0 0
    %452 = vmatpush1.bf16.msra.mxu0 0
    %453 = vmatprep.subr.bf16.mxu0 0
    %454 = vmatpush1.bf16.msra.mxu0 0
    %455 = vmatprep.subr.bf16.mxu0 0
    %456 = vmatpush1.bf16.msra.mxu0 0
    %457 = vmatprep.subr.bf16.mxu0 0
    %458 = vmatpush1.bf16.msra.mxu0 0
    %459 = vmatprep.subr.bf16.mxu0 0
    %460 = vmatpush1.bf16.msra.mxu0 0
    %461 = vmatprep.subr.bf16.mxu0 0
    %462 = vmatpush1.bf16.msra.mxu0 0
    %463 = vmatprep.subr.bf16.mxu0 0
    %464 = vmatpush1.bf16.msra.mxu0 0
    %465 = vmatprep.subr.bf16.mxu0 0
    %466 = vmatpush1.bf16.msra.mxu0 0
    %467 = vmatprep.subr.bf16.mxu0 0
    %468 = vmatpush1.bf16.msra.mxu0 0
    %469 = vmatprep.subr.bf16.mxu0 0
    %470 = vmatpush1.bf16.msra.mxu0 0
    %471 = vmatprep.mubr.bf16.mxu0 0
    %472 = vmatmul.mubr.bf16.gmra.mrb[0].mxu0 %v434
    %v473 = vpop.f32.mrb[0].mxu0
    %v474 = vadd.f32 0.0, %v473
    %v475 = vpop.f32.mrb[0].mxu0
    %v476 = vpop.f32.mrb[0].mxu0
    %v477 = vpop.f32.mrb[0].mxu0
    %478 = vdwg.mxu0
    %479 = vrot.lane.b32.xlu0 %v84, 56
    %v480 = vpop.permute.xlu0 %479
    %v482 = vsel %vm88, %v430, 0
    %v485 = vsel %vm213, %v480, 0
    %487 = vmatprep.subr.bf16.mxu0 0
    %488 = vmatpush1.bf16.msra.mxu0 %v485
    %489 = vmatprep.subr.bf16.mxu0 0
    %490 = vmatpush1.bf16.msra.mxu0 0
    %491 = vmatprep.subr.bf16.mxu0 0
    %492 = vmatpush1.bf16.msra.mxu0 0
    %493 = vmatprep.subr.bf16.mxu0 0
    %494 = vmatpush1.bf16.msra.mxu0 0
    %495 = vmatprep.subr.bf16.mxu0 0
    %496 = vmatpush1.bf16.msra.mxu0 0
    %497 = vmatprep.subr.bf16.mxu0 0
    %498 = vmatpush1.bf16.msra.mxu0 0
    %499 = vmatprep.subr.bf16.mxu0 0
    %500 = vmatpush1.bf16.msra.mxu0 0
    %501 = vmatprep.subr.bf16.mxu0 0
    %502 = vmatpush1.bf16.msra.mxu0 0
    %503 = vmatprep.subr.bf16.mxu0 0
    %504 = vmatpush1.bf16.msra.mxu0 0
    %505 = vmatprep.subr.bf16.mxu0 0
    %506 = vmatpush1.bf16.msra.mxu0 0
    %507 = vmatprep.subr.bf16.mxu0 0
    %508 = vmatpush1.bf16.msra.mxu0 0
    %509 = vmatprep.subr.bf16.mxu0 0
    %510 = vmatpush1.bf16.msra.mxu0 0
    %511 = vmatprep.subr.bf16.mxu0 0
    %512 = vmatpush1.bf16.msra.mxu0 0
    %513 = vmatprep.subr.bf16.mxu0 0
    %514 = vmatpush1.bf16.msra.mxu0 0
    %515 = vmatprep.subr.bf16.mxu0 0
    %516 = vmatpush1.bf16.msra.mxu0 0
    %517 = vmatprep.subr.bf16.mxu0 0
    %518 = vmatpush1.bf16.msra.mxu0 0
    %519 = vmatprep.mubr.bf16.mxu0 0
    %520 = vmatmul.mubr.bf16.gmra.mrb[0].mxu0 %v482
    %v521 = vpop.f32.mrb[0].mxu0
    %v522 = vadd.f32 0.0, %v521
    %v523 = vpop.f32.mrb[0].mxu0
    %v524 = vpop.f32.mrb[0].mxu0
    %v525 = vpop.f32.mrb[0].mxu0
    %526 = vdwg.mxu0
    %v527 = vpack.c.bf16 %v522, %v474
    %v528 = vld [vmem:[%s2 + $0x4] sm:$0xf]
    %v530 = vsel %vm88, %v527, 0
    %v533 = vsel %vm213, %v528, 0
    %535 = vmatprep.subr.bf16.mxu0 0
    %536 = vmatpush1.bf16.msra.mxu0 %v533
    %537 = vmatprep.subr.bf16.mxu0 0
    %538 = vmatpush1.bf16.msra.mxu0 0
    %539 = vmatprep.subr.bf16.mxu0 0
    %540 = vmatpush1.bf16.msra.mxu0 0
    %541 = vmatprep.subr.bf16.mxu0 0
    %542 = vmatpush1.bf16.msra.mxu0 0
    %543 = vmatprep.subr.bf16.mxu0 0
    %544 = vmatpush1.bf16.msra.mxu0 0
    %545 = vmatprep.subr.bf16.mxu0 0
    %546 = vmatpush1.bf16.msra.mxu0 0
    %547 = vmatprep.subr.bf16.mxu0 0
    %548 = vmatpush1.bf16.msra.mxu0 0
    %549 = vmatprep.subr.bf16.mxu0 0
    %550 = vmatpush1.bf16.msra.mxu0 0
    %551 = vmatprep.subr.bf16.mxu0 0
    %552 = vmatpush1.bf16.msra.mxu0 0
    %553 = vmatprep.subr.bf16.mxu0 0
    %554 = vmatpush1.bf16.msra.mxu0 0
    %555 = vmatprep.subr.bf16.mxu0 0
    %556 = vmatpush1.bf16.msra.mxu0 0
    %557 = vmatprep.subr.bf16.mxu0 0
    %558 = vmatpush1.bf16.msra.mxu0 0
    %559 = vmatprep.subr.bf16.mxu0 0
    %560 = vmatpush1.bf16.msra.mxu0 0
    %561 = vmatprep.subr.bf16.mxu0 0
    %562 = vmatpush1.bf16.msra.mxu0 0
    %563 = vmatprep.subr.bf16.mxu0 0
    %564 = vmatpush1.bf16.msra.mxu0 0
    %565 = vmatprep.subr.bf16.mxu0 0
    %566 = vmatpush1.bf16.msra.mxu0 0
    %567 = vmatprep.mubr.bf16.mxu0 0
    %568 = vmatmul.mubr.bf16.gmra.mrb[0].mxu0 %v530
    %v569 = vpop.f32.mrb[0].mxu0
    %v570 = vadd.f32 0.0, %v569
    %v571 = vpop.f32.mrb[0].mxu0
    %v572 = vpop.f32.mrb[0].mxu0
    %v573 = vadd.f32 0.0, %v572
    %v574 = vpop.f32.mrb[0].mxu0
    %575 = vdwg.mxu0
    %v577 = vsel %vm88, %v305, 0
    %v580 = vsel %vm213, %v306, 0
    %582 = vmatprep.subr.bf16.mxu0 0
    %583 = vmatpush1.bf16.msra.mxu0 %v580
    %584 = vmatprep.subr.bf16.mxu0 0
    %585 = vmatpush1.bf16.msra.mxu0 0
    %586 = vmatprep.subr.bf16.mxu0 0
    %587 = vmatpush1.bf16.msra.mxu0 0
    %588 = vmatprep.subr.bf16.mxu0 0
    %589 = vmatpush1.bf16.msra.mxu0 0
    %590 = vmatprep.subr.bf16.mxu0 0
    %591 = vmatpush1.bf16.msra.mxu0 0
    %592 = vmatprep.subr.bf16.mxu0 0
    %593 = vmatpush1.bf16.msra.mxu0 0
    %594 = vmatprep.subr.bf16.mxu0 0
    %595 = vmatpush1.bf16.msra.mxu0 0
    %596 = vmatprep.subr.bf16.mxu0 0
    %597 = vmatpush1.bf16.msra.mxu0 0
    %598 = vmatprep.subr.bf16.mxu0 0
    %599 = vmatpush1.bf16.msra.mxu0 0
    %600 = vmatprep.subr.bf16.mxu0 0
    %601 = vmatpush1.bf16.msra.mxu0 0
    %602 = vmatprep.subr.bf16.mxu0 0
    %603 = vmatpush1.bf16.msra.mxu0 0
    %604 = vmatprep.subr.bf16.mxu0 0
    %605 = vmatpush1.bf16.msra.mxu0 0
    %606 = vmatprep.subr.bf16.mxu0 0
    %607 = vmatpush1.bf16.msra.mxu0 0
    %608 = vmatprep.subr.bf16.mxu0 0
    %609 = vmatpush1.bf16.msra.mxu0 0
    %610 = vmatprep.subr.bf16.mxu0 0
    %611 = vmatpush1.bf16.msra.mxu0 0
    %612 = vmatprep.subr.bf16.mxu0 0
    %613 = vmatpush1.bf16.msra.mxu0 0
    %614 = vmatprep.mubr.bf16.mxu0 0
    %615 = vmatmul.mubr.bf16.gmra.mrb[0].mxu0 %v577
    %v616 = vpop.f32.mrb[0].mxu0
    %v617 = vadd.f32 %v570, %v616
    %v618 = vpop.f32.mrb[0].mxu0
    %v619 = vpop.f32.mrb[0].mxu0
    %v620 = vadd.f32 %v573, %v619
    %v621 = vpop.f32.mrb[0].mxu0
    %622 = vdwg.mxu0
    %623 = vrot.lane.b32.xlu0 %v83, 112
    %v624 = vpop.permute.xlu0 %623
    %625 = vrot.lane.b32.xlu0 %v83, 80
    %v626 = vpop.permute.xlu0 %625
    %v628 = vsel %vm88, %v624, 0
    %v631 = vsel %vm88, %v626, 0
    %633 = vmatprep.subr.bf16.mxu0 0
    %634 = vmatpush1.bf16.xpose.msra.mxu0 %v631
    %635 = vmatprep.subr.bf16.mxu0 0
    %636 = vmatpush1.bf16.xpose.msra.mxu0 0
    %637 = vmatprep.subr.bf16.mxu0 0
    %638 = vmatpush1.bf16.xpose.msra.mxu0 0
    %639 = vmatprep.subr.bf16.mxu0 0
    %640 = vmatpush1.bf16.xpose.msra.mxu0 0
    %641 = vmatprep.subr.bf16.mxu0 0
    %642 = vmatpush1.bf16.xpose.msra.mxu0 0
    %643 = vmatprep.subr.bf16.mxu0 0
    %644 = vmatpush1.bf16.xpose.msra.mxu0 0
    %645 = vmatprep.subr.bf16.mxu0 0
    %646 = vmatpush1.bf16.xpose.msra.mxu0 0
    %647 = vmatprep.subr.bf16.mxu0 0
    %648 = vmatpush1.bf16.xpose.msra.mxu0 0
    %649 = vmatprep.subr.bf16.mxu0 0
    %650 = vmatpush1.bf16.xpose.msra.mxu0 0
    %651 = vmatprep.subr.bf16.mxu0 0
    %652 = vmatpush1.bf16.xpose.msra.mxu0 0
    %653 = vmatprep.subr.bf16.mxu0 0
    %654 = vmatpush1.bf16.xpose.msra.mxu0 0
    %655 = vmatprep.subr.bf16.mxu0 0
    %656 = vmatpush1.bf16.xpose.msra.mxu0 0
    %657 = vmatprep.subr.bf16.mxu0 0
    %658 = vmatpush1.bf16.xpose.msra.mxu0 0
    %659 = vmatprep.subr.bf16.mxu0 0
    %660 = vmatpush1.bf16.xpose.msra.mxu0 0
    %661 = vmatprep.subr.bf16.mxu0 0
    %662 = vmatpush1.bf16.xpose.msra.mxu0 0
    %663 = vmatprep.subr.bf16.mxu0 0
    %664 = vmatpush1.bf16.xpose.msra.mxu0 0
    %665 = vmatprep.mubr.bf16.mxu0 0
    %666 = vmatmul.mubr.bf16.gmra.mrb[0].mxu0 %v628
    %v667 = vpop.f32.mrb[0].mxu0
    %v668 = vadd.f32 0.0, %v667
    %v669 = vpop.f32.mrb[0].mxu0
    %v670 = vpop.f32.mrb[0].mxu0
    %v671 = vpop.f32.mrb[0].mxu0
    %672 = vdwg.mxu0
    %673 = vrot.lane.b32.xlu0 %v84, 112
    %v674 = vpop.permute.xlu0 %673
    %675 = vrot.lane.b32.xlu0 %v84, 80
    %v676 = vpop.permute.xlu0 %675
    %v678 = vsel %vm88, %v674, 0
    %v681 = vsel %vm88, %v676, 0
    %683 = vmatprep.subr.bf16.mxu0 0
    %684 = vmatpush1.bf16.xpose.msra.mxu0 %v681
    %685 = vmatprep.subr.bf16.mxu0 0
    %686 = vmatpush1.bf16.xpose.msra.mxu0 0
    %687 = vmatprep.subr.bf16.mxu0 0
    %688 = vmatpush1.bf16.xpose.msra.mxu0 0
    %689 = vmatprep.subr.bf16.mxu0 0
    %690 = vmatpush1.bf16.xpose.msra.mxu0 0
    %691 = vmatprep.subr.bf16.mxu0 0
    %692 = vmatpush1.bf16.xpose.msra.mxu0 0
    %693 = vmatprep.subr.bf16.mxu0 0
    %694 = vmatpush1.bf16.xpose.msra.mxu0 0
    %695 = vmatprep.subr.bf16.mxu0 0
    %696 = vmatpush1.bf16.xpose.msra.mxu0 0
    %697 = vmatprep.subr.bf16.mxu0 0
    %698 = vmatpush1.bf16.xpose.msra.mxu0 0
    %699 = vmatprep.subr.bf16.mxu0 0
    %700 = vmatpush1.bf16.xpose.msra.mxu0 0
    %701 = vmatprep.subr.bf16.mxu0 0
    %702 = vmatpush1.bf16.xpose.msra.mxu0 0
    %703 = vmatprep.subr.bf16.mxu0 0
    %704 = vmatpush1.bf16.xpose.msra.mxu0 0
    %705 = vmatprep.subr.bf16.mxu0 0
    %706 = vmatpush1.bf16.xpose.msra.mxu0 0
    %707 = vmatprep.subr.bf16.mxu0 0
    %708 = vmatpush1.bf16.xpose.msra.mxu0 0
    %709 = vmatprep.subr.bf16.mxu0 0
    %710 = vmatpush1.bf16.xpose.msra.mxu0 0
    %711 = vmatprep.subr.bf16.mxu0 0
    %712 = vmatpush1.bf16.xpose.msra.mxu0 0
    %713 = vmatprep.subr.bf16.mxu0 0
    %714 = vmatpush1.bf16.xpose.msra.mxu0 0
    %715 = vmatprep.mubr.bf16.mxu0 0
    %716 = vmatmul.mubr.bf16.gmra.mrb[0].mxu0 %v678
    %v717 = vpop.f32.mrb[0].mxu0
    %v718 = vadd.f32 0.0, %v717
    %v719 = vpop.f32.mrb[0].mxu0
    %v720 = vpop.f32.mrb[0].mxu0
    %v721 = vpop.f32.mrb[0].mxu0
    %722 = vdwg.mxu0
    %v723 = vsel %vm88, %v668, -inf
    %724 = vmax.xlane.f32.xlu0 %v723
    %v725 = vpop.xlane.xlu0 %724
    %v726 = vsel %vm88, %v718, -inf
    %727 = vmax.xlane.f32.xlu0 %v726
    %v728 = vpop.xlane.xlu0 %727
    %v729 = vsub.f32 %v668, %v725
    %v730 = vsub.f32 %v718, %v728
    %v731 = vmul.f32 %v729, 1.442695
    %v732 = vpow.pop %v731
    %v733 = vmul.f32 %v730, 1.442695
    %v734 = vpow.pop %v733
    %v735 = vsel %vm88, %v732, 0.0
    %736 = vadd.xlane.f32.xlu0 %v735
    %v737 = vpop.xlane.xlu0 %736
    %v738 = vsel %vm88, %v734, 0.0
    %739 = vadd.xlane.f32.xlu0 %v738
    %v740 = vpop.xlane.xlu0 %739
    %v741 = vrcp.pop %v737
    %v742 = vmul.f32 %v732, %v741
    %v743 = vrcp.pop %v740
    %v744 = vmul.f32 %v734, %v743
    %v745 = vpack.c.bf16 %v742, %v742
    %v746 = vpack.c.bf16 %v744, %v744
    %747 = vrot.lane.b32.xlu0 %v83, 48
    %v748 = vpop.permute.xlu0 %747
    %v750 = vsel %vm88, %v745, 0
    %v753 = vsel %vm213, %v748, 0
    %755 = vmatprep.subr.bf16.mxu0 0
    %756 = vmatpush1.bf16.msra.mxu0 %v753
    %757 = vmatprep.subr.bf16.mxu0 0
    %758 = vmatpush1.bf16.msra.mxu0 0
    %759 = vmatprep.subr.bf16.mxu0 0
    %760 = vmatpush1.bf16.msra.mxu0 0
    %761 = vmatprep.subr.bf16.mxu0 0
    %762 = vmatpush1.bf16.msra.mxu0 0
    %763 = vmatprep.subr.bf16.mxu0 0
    %764 = vmatpush1.bf16.msra.mxu0 0
    %765 = vmatprep.subr.bf16.mxu0 0
    %766 = vmatpush1.bf16.msra.mxu0 0
    %767 = vmatprep.subr.bf16.mxu0 0
    %768 = vmatpush1.bf16.msra.mxu0 0
    %769 = vmatprep.subr.bf16.mxu0 0
    %770 = vmatpush1.bf16.msra.mxu0 0
    %771 = vmatprep.subr.bf16.mxu0 0
    %772 = vmatpush1.bf16.msra.mxu0 0
    %773 = vmatprep.subr.bf16.mxu0 0
    %774 = vmatpush1.bf16.msra.mxu0 0
    %775 = vmatprep.subr.bf16.mxu0 0
    %776 = vmatpush1.bf16.msra.mxu0 0
    %777 = vmatprep.subr.bf16.mxu0 0
    %778 = vmatpush1.bf16.msra.mxu0 0
    %779 = vmatprep.subr.bf16.mxu0 0
    %780 = vmatpush1.bf16.msra.mxu0 0
    %781 = vmatprep.subr.bf16.mxu0 0
    %782 = vmatpush1.bf16.msra.mxu0 0
    %783 = vmatprep.subr.bf16.mxu0 0
    %784 = vmatpush1.bf16.msra.mxu0 0
    %785 = vmatprep.subr.bf16.mxu0 0
    %786 = vmatpush1.bf16.msra.mxu0 0
    %787 = vmatprep.mubr.bf16.mxu0 0
    %788 = vmatmul.mubr.bf16.gmra.mrb[0].mxu0 %v750
    %v789 = vpop.f32.mrb[0].mxu0
    %v790 = vadd.f32 0.0, %v789
    %v791 = vpop.f32.mrb[0].mxu0
    %v792 = vpop.f32.mrb[0].mxu0
    %v793 = vpop.f32.mrb[0].mxu0
    %794 = vdwg.mxu0
    %795 = vrot.lane.b32.xlu0 %v84, 48
    %v796 = vpop.permute.xlu0 %795
    %v798 = vsel %vm88, %v746, 0
    %v801 = vsel %vm213, %v796, 0
    %803 = vmatprep.subr.bf16.mxu0 0
    %804 = vmatpush1.bf16.msra.mxu0 %v801
    %805 = vmatprep.subr.bf16.mxu0 0
    %806 = vmatpush1.bf16.msra.mxu0 0
    %807 = vmatprep.subr.bf16.mxu0 0
    %808 = vmatpush1.bf16.msra.mxu0 0
    %809 = vmatprep.subr.bf16.mxu0 0
    %810 = vmatpush1.bf16.msra.mxu0 0
    %811 = vmatprep.subr.bf16.mxu0 0
    %812 = vmatpush1.bf16.msra.mxu0 0
    %813 = vmatprep.subr.bf16.mxu0 0
    %814 = vmatpush1.bf16.msra.mxu0 0
    %815 = vmatprep.subr.bf16.mxu0 0
    %816 = vmatpush1.bf16.msra.mxu0 0
    %817 = vmatprep.subr.bf16.mxu0 0
    %818 = vmatpush1.bf16.msra.mxu0 0
    %819 = vmatprep.subr.bf16.mxu0 0
    %820 = vmatpush1.bf16.msra.mxu0 0
    %821 = vmatprep.subr.bf16.mxu0 0
    %822 = vmatpush1.bf16.msra.mxu0 0
    %823 = vmatprep.subr.bf16.mxu0 0
    %824 = vmatpush1.bf16.msra.mxu0 0
    %825 = vmatprep.subr.bf16.mxu0 0
    %826 = vmatpush1.bf16.msra.mxu0 0
    %827 = vmatprep.subr.bf16.mxu0 0
    %828 = vmatpush1.bf16.msra.mxu0 0
    %829 = vmatprep.subr.bf16.mxu0 0
    %830 = vmatpush1.bf16.msra.mxu0 0
    %831 = vmatprep.subr.bf16.mxu0 0
    %832 = vmatpush1.bf16.msra.mxu0 0
    %833 = vmatprep.subr.bf16.mxu0 0
    %834 = vmatpush1.bf16.msra.mxu0 0
    %835 = vmatprep.mubr.bf16.mxu0 0
    %836 = vmatmul.mubr.bf16.gmra.mrb[0].mxu0 %v798
    %v837 = vpop.f32.mrb[0].mxu0
    %v838 = vadd.f32 0.0, %v837
    %v839 = vpop.f32.mrb[0].mxu0
    %v840 = vpop.f32.mrb[0].mxu0
    %v841 = vpop.f32.mrb[0].mxu0
    %842 = vdwg.mxu0
    %v843 = vpack.c.bf16 %v838, %v790
    %v844 = vld [vmem:[%s2 + $0x8] sm:$0xf]
    %v846 = vsel %vm88, %v843, 0
    %v849 = vsel %vm213, %v844, 0
    %851 = vmatprep.subr.bf16.mxu0 0
    %852 = vmatpush1.bf16.msra.mxu0 %v849
    %853 = vmatprep.subr.bf16.mxu0 0
    %854 = vmatpush1.bf16.msra.mxu0 0
    %855 = vmatprep.subr.bf16.mxu0 0
    %856 = vmatpush1.bf16.msra.mxu0 0
    %857 = vmatprep.subr.bf16.mxu0 0
    %858 = vmatpush1.bf16.msra.mxu0 0
    %859 = vmatprep.subr.bf16.mxu0 0
    %860 = vmatpush1.bf16.msra.mxu0 0
    %861 = vmatprep.subr.bf16.mxu0 0
    %862 = vmatpush1.bf16.msra.mxu0 0
    %863 = vmatprep.subr.bf16.mxu0 0
    %864 = vmatpush1.bf16.msra.mxu0 0
    %865 = vmatprep.subr.bf16.mxu0 0
    %866 = vmatpush1.bf16.msra.mxu0 0
    %867 = vmatprep.subr.bf16.mxu0 0
    %868 = vmatpush1.bf16.msra.mxu0 0
    %869 = vmatprep.subr.bf16.mxu0 0
    %870 = vmatpush1.bf16.msra.mxu0 0
    %871 = vmatprep.subr.bf16.mxu0 0
    %872 = vmatpush1.bf16.msra.mxu0 0
    %873 = vmatprep.subr.bf16.mxu0 0
    %874 = vmatpush1.bf16.msra.mxu0 0
    %875 = vmatprep.subr.bf16.mxu0 0
    %876 = vmatpush1.bf16.msra.mxu0 0
    %877 = vmatprep.subr.bf16.mxu0 0
    %878 = vmatpush1.bf16.msra.mxu0 0
    %879 = vmatprep.subr.bf16.mxu0 0
    %880 = vmatpush1.bf16.msra.mxu0 0
    %881 = vmatprep.subr.bf16.mxu0 0
    %882 = vmatpush1.bf16.msra.mxu0 0
    %883 = vmatprep.mubr.bf16.mxu0 0
    %884 = vmatmul.mubr.bf16.gmra.mrb[0].mxu0 %v846
    %v885 = vpop.f32.mrb[0].mxu0
    %v886 = vadd.f32 0.0, %v885
    %v887 = vpop.f32.mrb[0].mxu0
    %v888 = vpop.f32.mrb[0].mxu0
    %v889 = vadd.f32 0.0, %v888
    %v890 = vpop.f32.mrb[0].mxu0
    %891 = vdwg.mxu0
    %v892 = vadd.f32 %v617, %v886
    %v893 = vadd.f32 %v620, %v889
    %894 = vrot.lane.b32.xlu0 %v83, 104
    %v895 = vpop.permute.xlu0 %894
    %896 = vrot.lane.b32.xlu0 %v83, 72
    %v897 = vpop.permute.xlu0 %896
    %v899 = vsel %vm88, %v895, 0
    %v902 = vsel %vm88, %v897, 0
    %904 = vmatprep.subr.bf16.mxu0 0
    %905 = vmatpush1.bf16.xpose.msra.mxu0 %v902
    %906 = vmatprep.subr.bf16.mxu0 0
    %907 = vmatpush1.bf16.xpose.msra.mxu0 0
    %908 = vmatprep.subr.bf16.mxu0 0
    %909 = vmatpush1.bf16.xpose.msra.mxu0 0
    %910 = vmatprep.subr.bf16.mxu0 0
    %911 = vmatpush1.bf16.xpose.msra.mxu0 0
    %912 = vmatprep.subr.bf16.mxu0 0
    %913 = vmatpush1.bf16.xpose.msra.mxu0 0
    %914 = vmatprep.subr.bf16.mxu0 0
    %915 = vmatpush1.bf16.xpose.msra.mxu0 0
    %916 = vmatprep.subr.bf16.mxu0 0
    %917 = vmatpush1.bf16.xpose.msra.mxu0 0
    %918 = vmatprep.subr.bf16.mxu0 0
    %919 = vmatpush1.bf16.xpose.msra.mxu0 0
    %920 = vmatprep.subr.bf16.mxu0 0
    %921 = vmatpush1.bf16.xpose.msra.mxu0 0
    %922 = vmatprep.subr.bf16.mxu0 0
    %923 = vmatpush1.bf16.xpose.msra.mxu0 0
    %924 = vmatprep.subr.bf16.mxu0 0
    %925 = vmatpush1.bf16.xpose.msra.mxu0 0
    %926 = vmatprep.subr.bf16.mxu0 0
    %927 = vmatpush1.bf16.xpose.msra.mxu0 0
    %928 = vmatprep.subr.bf16.mxu0 0
    %929 = vmatpush1.bf16.xpose.msra.mxu0 0
    %930 = vmatprep.subr.bf16.mxu0 0
    %931 = vmatpush1.bf16.xpose.msra.mxu0 0
    %932 = vmatprep.subr.bf16.mxu0 0
    %933 = vmatpush1.bf16.xpose.msra.mxu0 0
    %934 = vmatprep.subr.bf16.mxu0 0
    %935 = vmatpush1.bf16.xpose.msra.mxu0 0
    %936 = vmatprep.mubr.bf16.mxu0 0
    %937 = vmatmul.mubr.bf16.gmra.mrb[0].mxu0 %v899
    %v938 = vpop.f32.mrb[0].mxu0
    %v939 = vadd.f32 0.0, %v938
    %v940 = vpop.f32.mrb[0].mxu0
    %v941 = vpop.f32.mrb[0].mxu0
    %v942 = vpop.f32.mrb[0].mxu0
    %943 = vdwg.mxu0
    %944 = vrot.lane.b32.xlu0 %v84, 104
    %v945 = vpop.permute.xlu0 %944
    %946 = vrot.lane.b32.xlu0 %v84, 72
    %v947 = vpop.permute.xlu0 %946
    %v949 = vsel %vm88, %v945, 0
    %v952 = vsel %vm88, %v947, 0
    %954 = vmatprep.subr.bf16.mxu0 0
    %955 = vmatpush1.bf16.xpose.msra.mxu0 %v952
    %956 = vmatprep.subr.bf16.mxu0 0
    %957 = vmatpush1.bf16.xpose.msra.mxu0 0
    %958 = vmatprep.subr.bf16.mxu0 0
    %959 = vmatpush1.bf16.xpose.msra.mxu0 0
    %960 = vmatprep.subr.bf16.mxu0 0
    %961 = vmatpush1.bf16.xpose.msra.mxu0 0
    %962 = vmatprep.subr.bf16.mxu0 0
    %963 = vmatpush1.bf16.xpose.msra.mxu0 0
    %964 = vmatprep.subr.bf16.mxu0 0
    %965 = vmatpush1.bf16.xpose.msra.mxu0 0
    %966 = vmatprep.subr.bf16.mxu0 0
    %967 = vmatpush1.bf16.xpose.msra.mxu0 0
    %968 = vmatprep.subr.bf16.mxu0 0
    %969 = vmatpush1.bf16.xpose.msra.mxu0 0
    %970 = vmatprep.subr.bf16.mxu0 0
    %971 = vmatpush1.bf16.xpose.msra.mxu0 0
    %972 = vmatprep.subr.bf16.mxu0 0
    %973 = vmatpush1.bf16.xpose.msra.mxu0 0
    %974 = vmatprep.subr.bf16.mxu0 0
    %975 = vmatpush1.bf16.xpose.msra.mxu0 0
    %976 = vmatprep.subr.bf16.mxu0 0
    %977 = vmatpush1.bf16.xpose.msra.mxu0 0
    %978 = vmatprep.subr.bf16.mxu0 0
    %979 = vmatpush1.bf16.xpose.msra.mxu0 0
    %980 = vmatprep.subr.bf16.mxu0 0
    %981 = vmatpush1.bf16.xpose.msra.mxu0 0
    %982 = vmatprep.subr.bf16.mxu0 0
    %983 = vmatpush1.bf16.xpose.msra.mxu0 0
    %984 = vmatprep.subr.bf16.mxu0 0
    %985 = vmatpush1.bf16.xpose.msra.mxu0 0
    %986 = vmatprep.mubr.bf16.mxu0 0
    %987 = vmatmul.mubr.bf16.gmra.mrb[0].mxu0 %v949
    %v988 = vpop.f32.mrb[0].mxu0
    %v989 = vadd.f32 0.0, %v988
    %v990 = vpop.f32.mrb[0].mxu0
    %v991 = vpop.f32.mrb[0].mxu0
    %v992 = vpop.f32.mrb[0].mxu0
    %993 = vdwg.mxu0
    %v994 = vsel %vm88, %v939, -inf
    %995 = vmax.xlane.f32.xlu0 %v994
    %v996 = vpop.xlane.xlu0 %995
    %v997 = vsel %vm88, %v989, -inf
    %998 = vmax.xlane.f32.xlu0 %v997
    %v999 = vpop.xlane.xlu0 %998
    %v1000 = vsub.f32 %v939, %v996
    %v1001 = vsub.f32 %v989, %v999
    %v1002 = vmul.f32 %v1000, 1.442695
    %v1003 = vpow.pop %v1002
    %v1004 = vmul.f32 %v1001, 1.442695
    %v1005 = vpow.pop %v1004
    %v1006 = vsel %vm88, %v1003, 0.0
    %1007 = vadd.xlane.f32.xlu0 %v1006
    %v1008 = vpop.xlane.xlu0 %1007
    %v1009 = vsel %vm88, %v1005, 0.0
    %1010 = vadd.xlane.f32.xlu0 %v1009
    %v1011 = vpop.xlane.xlu0 %1010
    %v1012 = vrcp.pop %v1008
    %v1013 = vmul.f32 %v1003, %v1012
    %v1014 = vrcp.pop %v1011
    %v1015 = vmul.f32 %v1005, %v1014
    %v1016 = vpack.c.bf16 %v1013, %v1013
    %v1017 = vpack.c.bf16 %v1015, %v1015
    %1018 = vrot.lane.b32.xlu0 %v83, 40
    %v1019 = vpop.permute.xlu0 %1018
    %v1021 = vsel %vm88, %v1016, 0
    %v1024 = vsel %vm213, %v1019, 0
    %1026 = vmatprep.subr.bf16.mxu0 0
    %1027 = vmatpush1.bf16.msra.mxu0 %v1024
    %1028 = vmatprep.subr.bf16.mxu0 0
    %1029 = vmatpush1.bf16.msra.mxu0 0
    %1030 = vmatprep.subr.bf16.mxu0 0
    %1031 = vmatpush1.bf16.msra.mxu0 0
    %1032 = vmatprep.subr.bf16.mxu0 0
    %1033 = vmatpush1.bf16.msra.mxu0 0
    %1034 = vmatprep.subr.bf16.mxu0 0
    %1035 = vmatpush1.bf16.msra.mxu0 0
    %1036 = vmatprep.subr.bf16.mxu0 0
    %1037 = vmatpush1.bf16.msra.mxu0 0
    %1038 = vmatprep.subr.bf16.mxu0 0
    %1039 = vmatpush1.bf16.msra.mxu0 0
    %1040 = vmatprep.subr.bf16.mxu0 0
    %1041 = vmatpush1.bf16.msra.mxu0 0
    %1042 = vmatprep.subr.bf16.mxu0 0
    %1043 = vmatpush1.bf16.msra.mxu0 0
    %1044 = vmatprep.subr.bf16.mxu0 0
    %1045 = vmatpush1.bf16.msra.mxu0 0
    %1046 = vmatprep.subr.bf16.mxu0 0
    %1047 = vmatpush1.bf16.msra.mxu0 0
    %1048 = vmatprep.subr.bf16.mxu0 0
    %1049 = vmatpush1.bf16.msra.mxu0 0
    %1050 = vmatprep.subr.bf16.mxu0 0
    %1051 = vmatpush1.bf16.msra.mxu0 0
    %1052 = vmatprep.subr.bf16.mxu0 0
    %1053 = vmatpush1.bf16.msra.mxu0 0
    %1054 = vmatprep.subr.bf16.mxu0 0
    %1055 = vmatpush1.bf16.msra.mxu0 0
    %1056 = vmatprep.subr.bf16.mxu0 0
    %1057 = vmatpush1.bf16.msra.mxu0 0
    %1058 = vmatprep.mubr.bf16.mxu0 0
    %1059 = vmatmul.mubr.bf16.gmra.mrb[0].mxu0 %v1021
    %v1060 = vpop.f32.mrb[0].mxu0
    %v1061 = vadd.f32 0.0, %v1060
    %v1062 = vpop.f32.mrb[0].mxu0
    %v1063 = vpop.f32.mrb[0].mxu0
    %v1064 = vpop.f32.mrb[0].mxu0
    %1065 = vdwg.mxu0
    %1066 = vrot.lane.b32.xlu0 %v84, 40
    %v1067 = vpop.permute.xlu0 %1066
    %v1069 = vsel %vm88, %v1017, 0
    %v1072 = vsel %vm213, %v1067, 0
    %1074 = vmatprep.subr.bf16.mxu0 0
    %1075 = vmatpush1.bf16.msra.mxu0 %v1072
    %1076 = vmatprep.subr.bf16.mxu0 0
    %1077 = vmatpush1.bf16.msra.mxu0 0
    %1078 = vmatprep.subr.bf16.mxu0 0
    %1079 = vmatpush1.bf16.msra.mxu0 0
    %1080 = vmatprep.subr.bf16.mxu0 0
    %1081 = vmatpush1.bf16.msra.mxu0 0
    %1082 = vmatprep.subr.bf16.mxu0 0
    %1083 = vmatpush1.bf16.msra.mxu0 0
    %1084 = vmatprep.subr.bf16.mxu0 0
    %1085 = vmatpush1.bf16.msra.mxu0 0
    %1086 = vmatprep.subr.bf16.mxu0 0
    %1087 = vmatpush1.bf16.msra.mxu0 0
    %1088 = vmatprep.subr.bf16.mxu0 0
    %1089 = vmatpush1.bf16.msra.mxu0 0
    %1090 = vmatprep.subr.bf16.mxu0 0
    %1091 = vmatpush1.bf16.msra.mxu0 0
    %1092 = vmatprep.subr.bf16.mxu0 0
    %1093 = vmatpush1.bf16.msra.mxu0 0
    %1094 = vmatprep.subr.bf16.mxu0 0
    %1095 = vmatpush1.bf16.msra.mxu0 0
    %1096 = vmatprep.subr.bf16.mxu0 0
    %1097 = vmatpush1.bf16.msra.mxu0 0
    %1098 = vmatprep.subr.bf16.mxu0 0
    %1099 = vmatpush1.bf16.msra.mxu0 0
    %1100 = vmatprep.subr.bf16.mxu0 0
    %1101 = vmatpush1.bf16.msra.mxu0 0
    %1102 = vmatprep.subr.bf16.mxu0 0
    %1103 = vmatpush1.bf16.msra.mxu0 0
    %1104 = vmatprep.subr.bf16.mxu0 0
    %1105 = vmatpush1.bf16.msra.mxu0 0
    %1106 = vmatprep.mubr.bf16.mxu0 0
    %1107 = vmatmul.mubr.bf16.gmra.mrb[0].mxu0 %v1069
    %v1108 = vpop.f32.mrb[0].mxu0
    %v1109 = vadd.f32 0.0, %v1108
    %v1110 = vpop.f32.mrb[0].mxu0
    %v1111 = vpop.f32.mrb[0].mxu0
    %v1112 = vpop.f32.mrb[0].mxu0
    %1113 = vdwg.mxu0
    %v1114 = vpack.c.bf16 %v1109, %v1061
    %v1115 = vld [vmem:[%s2 + $0xc] sm:$0xf]
    %v1117 = vsel %vm88, %v1114, 0
    %v1120 = vsel %vm213, %v1115, 0
    %1122 = vmatprep.subr.bf16.mxu0 0
    %1123 = vmatpush1.bf16.msra.mxu0 %v1120
    %1124 = vmatprep.subr.bf16.mxu0 0
    %1125 = vmatpush1.bf16.msra.mxu0 0
    %1126 = vmatprep.subr.bf16.mxu0 0
    %1127 = vmatpush1.bf16.msra.mxu0 0
    %1128 = vmatprep.subr.bf16.mxu0 0
    %1129 = vmatpush1.bf16.msra.mxu0 0
    %1130 = vmatprep.subr.bf16.mxu0 0
    %1131 = vmatpush1.bf16.msra.mxu0 0
    %1132 = vmatprep.subr.bf16.mxu0 0
    %1133 = vmatpush1.bf16.msra.mxu0 0
    %1134 = vmatprep.subr.bf16.mxu0 0
    %1135 = vmatpush1.bf16.msra.mxu0 0
    %1136 = vmatprep.subr.bf16.mxu0 0
    %1137 = vmatpush1.bf16.msra.mxu0 0
    %1138 = vmatprep.subr.bf16.mxu0 0
    %1139 = vmatpush1.bf16.msra.mxu0 0
    %1140 = vmatprep.subr.bf16.mxu0 0
    %1141 = vmatpush1.bf16.msra.mxu0 0
    %1142 = vmatprep.subr.bf16.mxu0 0
    %1143 = vmatpush1.bf16.msra.mxu0 0
    %1144 = vmatprep.subr.bf16.mxu0 0
    %1145 = vmatpush1.bf16.msra.mxu0 0
    %1146 = vmatprep.subr.bf16.mxu0 0
    %1147 = vmatpush1.bf16.msra.mxu0 0
    %1148 = vmatprep.subr.bf16.mxu0 0
    %1149 = vmatpush1.bf16.msra.mxu0 0
    %1150 = vmatprep.subr.bf16.mxu0 0
    %1151 = vmatpush1.bf16.msra.mxu0 0
    %1152 = vmatprep.subr.bf16.mxu0 0
    %1153 = vmatpush1.bf16.msra.mxu0 0
    %1154 = vmatprep.mubr.bf16.mxu0 0
    %1155 = vmatmul.mubr.bf16.gmra.mrb[0].mxu0 %v1117
    %v1156 = vpop.f32.mrb[0].mxu0
    %v1157 = vadd.f32 0.0, %v1156
    %v1158 = vpop.f32.mrb[0].mxu0
    %v1159 = vpop.f32.mrb[0].mxu0
    %v1160 = vadd.f32 0.0, %v1159
    %v1161 = vpop.f32.mrb[0].mxu0
    %1162 = vdwg.mxu0
    %v1163 = vadd.f32 %v892, %v1157
    %v1164 = vadd.f32 %v893, %v1160
    %v1165 = vld [vmem:[%s3] sm:$0xff]
    %v1166 = vld [vmem:[%s3 + $0x8] sm:$0xff]
    %v1167 = vld [vmem:[%s3 + $0x10] sm:$0xff]
    %v1168 = vld [vmem:[%s3 + $0x18] sm:$0xff]
    %v1169 = vld [vmem:[%s3 + $0x20] sm:$0xff]
    %v1170 = vld [vmem:[%s3 + $0x28] sm:$0xff]
    %v1171 = vld [vmem:[%s3 + $0x30] sm:$0xff]
    %v1172 = vld [vmem:[%s3 + $0x38] sm:$0xff]
    %v1173 = vld [vmem:[%s3 + $0x40] sm:$0x3f]
    %v1174 = vpack.c.bf16 %v1166, %v1165
    %v1175 = vpack.c.bf16 %v1168, %v1167
    %v1176 = vpack.c.bf16 %v1170, %v1169
    %v1177 = vpack.c.bf16 %v1172, %v1171
    %v1178 = vadd.f32 %v19, %v1163
    %v1179 = vadd.f32 %v20, %v1164
    %v1180 = vsel %vm38, %v1178, 0.0
    %1181 = vadd.xlane.f32.xlu0 %v1180
    %v1182 = vpop.xlane.xlu0 %1181
    %v1183 = vsel %vm38, %v1179, 0.0
    %1184 = vadd.xlane.f32.xlu0 %v1183
    %v1185 = vpop.xlane.xlu0 %1184
    %v1186 = vrcp.pop 32.0
    %v1187 = vmul.f32 %v1182, %v1186
    %v1188 = vmul.f32 %v1185, %v1186
    %v1189 = vsub.f32 %v1178, %v1187
    %v1190 = vsub.f32 %v1179, %v1188
    %v1191 = vmul.f32 %v1189, %v1189
    %v1192 = vmul.f32 %v1190, %v1190
    %v1193 = vsel %vm38, %v1191, 0.0
    %1194 = vadd.xlane.f32.xlu0 %v1193
    %v1195 = vpop.xlane.xlu0 %1194
    %v1196 = vsel %vm38, %v1192, 0.0
    %1197 = vadd.xlane.f32.xlu0 %v1196
    %v1198 = vpop.xlane.xlu0 %1197
    %v1199 = vmul.f32 %v1195, %v1186
    %v1200 = vmul.f32 %v1198, %v1186
    %v1201 = vadd.f32 %v1199, 1e-05
    %v1202 = vadd.f32 %v1200, 1e-05
    %v1203 = vrsqrt.pop %v1201
    %v1204 = vrsqrt.pop %v1202
    %v1205 = vmul.f32 %v1189, %v1203
    %v1206 = vmul.f32 %v1190, %v1204
    %v1207 = vlaneseq
    %v1208 = vshrl.u32 %v1207, 7
    %v1209 = vsub.s32 2, %v1208
    %v1210 = vrot.slane %v1173, %v1209
    %v1211 = vmul.f32 %v1205, %v1210
    %v1212 = vmul.f32 %v1206, %v1210
    %v1213 = vlaneseq
    %v1214 = vshrl.u32 %v1213, 7
    %v1215 = vsub.s32 3, %v1214
    %v1216 = vrot.slane %v1173, %v1215
    %v1217 = vadd.f32 %v1211, %v1216
    %v1218 = vadd.f32 %v1212, %v1216
    %v1219 = vpack.c.bf16 %v1218, %v1217
    %v1220 = vlaneseq
    %v1221 = vshrl.u32 %v1220, 7
    %v1222 = vsub.s32 0, %v1221
    %v1223 = vrot.slane %v1173, %v1222
    %v1225 = vsel %vm38, %v1219, 0
    %1227 = vmatprep.subr.bf16.mxu0 0
    %1228 = vmatpush1.bf16.msra.mxu0 %v1174
    %1229 = vmatprep.subr.bf16.mxu0 0
    %1230 = vmatpush1.bf16.msra.mxu0 %v1175
    %1231 = vmatprep.subr.bf16.mxu0 0
    %1232 = vmatpush1.bf16.msra.mxu0 0
    %1233 = vmatprep.subr.bf16.mxu0 0
    %1234 = vmatpush1.bf16.msra.mxu0 0
    %1235 = vmatprep.subr.bf16.mxu0 0
    %1236 = vmatpush1.bf16.msra.mxu0 0
    %1237 = vmatprep.subr.bf16.mxu0 0
    %1238 = vmatpush1.bf16.msra.mxu0 0
    %1239 = vmatprep.subr.bf16.mxu0 0
    %1240 = vmatpush1.bf16.msra.mxu0 0
    %1241 = vmatprep.subr.bf16.mxu0 0
    %1242 = vmatpush1.bf16.msra.mxu0 0
    %1243 = vmatprep.subr.bf16.mxu0 0
    %1244 = vmatpush1.bf16.msra.mxu0 0
    %1245 = vmatprep.subr.bf16.mxu0 0
    %1246 = vmatpush1.bf16.msra.mxu0 0
    %1247 = vmatprep.subr.bf16.mxu0 0
    %1248 = vmatpush1.bf16.msra.mxu0 0
    %1249 = vmatprep.subr.bf16.mxu0 0
    %1250 = vmatpush1.bf16.msra.mxu0 0
    %1251 = vmatprep.subr.bf16.mxu0 0
    %1252 = vmatpush1.bf16.msra.mxu0 0
    %1253 = vmatprep.subr.bf16.mxu0 0
    %1254 = vmatpush1.bf16.msra.mxu0 0
    %1255 = vmatprep.subr.bf16.mxu0 0
    %1256 = vmatpush1.bf16.msra.mxu0 0
    %1257 = vmatprep.subr.bf16.mxu0 0
    %1258 = vmatpush1.bf16.msra.mxu0 0
    %1259 = vmatprep.mubr.bf16.mxu0 0
    %1260 = vmatmul.mubr.bf16.gmra.mrb[0].mxu0 %v1225
    %v1261 = vpop.f32.mrb[0].mxu0
    %v1262 = vadd.f32 %v1223, %v1261
    %v1263 = vpop.f32.mrb[0].mxu0
    %v1264 = vpop.f32.mrb[0].mxu0
    %v1265 = vadd.f32 %v1223, %v1264
    %v1266 = vpop.f32.mrb[0].mxu0
    %1267 = vdwg.mxu0
    %v1268 = vmax.f32 %v1262, 0.0
    %v1269 = vmax.f32 %v1265, 0.0
    %v1270 = vpack.c.bf16 %v1269, %v1268
    %v1271 = vlaneseq
    %v1272 = vshrl.u32 %v1271, 7
    %v1273 = vsub.s32 1, %v1272
    %v1274 = vrot.slane %v1173, %v1273
    %v1276 = vsel %vm38, %v1270, 0
    %1278 = vmatprep.subr.bf16.mxu0 0
    %1279 = vmatpush1.bf16.msra.mxu0 %v1176
    %1280 = vmatprep.subr.bf16.mxu0 0
    %1281 = vmatpush1.bf16.msra.mxu0 %v1177
    %1282 = vmatprep.subr.bf16.mxu0 0
    %1283 = vmatpush1.bf16.msra.mxu0 0
    %1284 = vmatprep.subr.bf16.mxu0 0
    %1285 = vmatpush1.bf16.msra.mxu0 0
    %1286 = vmatprep.subr.bf16.mxu0 0
    %1287 = vmatpush1.bf16.msra.mxu0 0
    %1288 = vmatprep.subr.bf16.mxu0 0
    %1289 = vmatpush1.bf16.msra.mxu0 0
    %1290 = vmatprep.subr.bf16.mxu0 0
    %1291 = vmatpush1.bf16.msra.mxu0 0
    %1292 = vmatprep.subr.bf16.mxu0 0
    %1293 = vmatpush1.bf16.msra.mxu0 0
    %1294 = vmatprep.subr.bf16.mxu0 0
    %1295 = vmatpush1.bf16.msra.mxu0 0
    %1296 = vmatprep.subr.bf16.mxu0 0
    %1297 = vmatpush1.bf16.msra.mxu0 0
    %1298 = vmatprep.subr.bf16.mxu0 0
    %1299 = vmatpush1.bf16.msra.mxu0 0
    %1300 = vmatprep.subr.bf16.mxu0 0
    %1301 = vmatpush1.bf16.msra.mxu0 0
    %1302 = vmatprep.subr.bf16.mxu0 0
    %1303 = vmatpush1.bf16.msra.mxu0 0
    %1304 = vmatprep.subr.bf16.mxu0 0
    %1305 = vmatpush1.bf16.msra.mxu0 0
    %1306 = vmatprep.subr.bf16.mxu0 0
    %1307 = vmatpush1.bf16.msra.mxu0 0
    %1308 = vmatprep.subr.bf16.mxu0 0
    %1309 = vmatpush1.bf16.msra.mxu0 0
    %1310 = vmatprep.mubr.bf16.mxu0 0
    %1311 = vmatmul.mubr.bf16.gmra.mrb[0].mxu0 %v1276
    %v1312 = vpop.f32.mrb[0].mxu0
    %v1313 = vadd.f32 %v1274, %v1312
    %v1314 = vpop.f32.mrb[0].mxu0
    %v1315 = vpop.f32.mrb[0].mxu0
    %v1316 = vadd.f32 %v1274, %v1315
    %v1317 = vpop.f32.mrb[0].mxu0
    %1318 = vdwg.mxu0
    %v1319 = vadd.f32 %v1217, %v1313
    %v1320 = vadd.f32 %v1218, %v1316
    %v1321 = vsel %vm38, %v1319, 0.0
    %1322 = vadd.xlane.f32.xlu0 %v1321
    %v1323 = vpop.xlane.xlu0 %1322
    %v1324 = vsel %vm38, %v1320, 0.0
    %1325 = vadd.xlane.f32.xlu0 %v1324
    %v1326 = vpop.xlane.xlu0 %1325
    %v1327 = vmul.f32 %v1323, %v1186
    %v1328 = vmul.f32 %v1326, %v1186
    %v1329 = vsub.f32 %v1319, %v1327
    %v1330 = vsub.f32 %v1320, %v1328
    %v1331 = vmul.f32 %v1329, %v1329
    %v1332 = vmul.f32 %v1330, %v1330
    %v1333 = vsel %vm38, %v1331, 0.0
    %1334 = vadd.xlane.f32.xlu0 %v1333
    %v1335 = vpop.xlane.xlu0 %1334
    %v1336 = vsel %vm38, %v1332, 0.0
    %1337 = vadd.xlane.f32.xlu0 %v1336
    %v1338 = vpop.xlane.xlu0 %1337
    %v1339 = vmul.f32 %v1335, %v1186
    %v1340 = vmul.f32 %v1338, %v1186
    %v1341 = vadd.f32 %v1339, 1e-05
    %v1342 = vadd.f32 %v1340, 1e-05
    %v1343 = vrsqrt.pop %v1341
    %v1344 = vrsqrt.pop %v1342
    %v1345 = vmul.f32 %v1329, %v1343
    %v1346 = vmul.f32 %v1330, %v1344
    %v1347 = vlaneseq
    %v1348 = vshrl.u32 %v1347, 7
    %v1349 = vsub.s32 4, %v1348
    %v1350 = vrot.slane %v1173, %v1349
    %v1351 = vmul.f32 %v1345, %v1350
    %v1352 = vmul.f32 %v1346, %v1350
    %v1353 = vlaneseq
    %v1354 = vshrl.u32 %v1353, 7
    %v1355 = vsub.s32 5, %v1354
    %v1356 = vrot.slane %v1173, %v1355
    %v1357 = vadd.f32 %v1351, %v1356
    %v1358 = vadd.f32 %v1352, %v1356
    %1359 = vst.msk [vmem:[#allocation2] sm:$0xff] %vm38, %v1357
    %1360 = vst.msk [vmem:[#allocation2 + $0x8] sm:$0xff] %vm38, %v1358
    // Predicated region
    $region18: #{tpu_custom_call.1} parent=1 // pred_check
      _
    $region19: #{tpu_custom_call.1} parent=1 // pred_check_branch
      %1362 = sbr.rel (0) target = $region21
    $region20: #{tpu_custom_call.1} parent=1 // pred_region
      %s1364 = ssub.s32 256, 256
      %1365 = vsyncadd [#allocation3], %s1364
      %s1366 = sshll.u32 [#allocation2], 4
      %s1367 = int_to_ptr.vmem [resolvable:$true] %s1366
      %1372 = dma.vmem_to_hbm [thread:$0]  %s1367, 256, %s4, [#allocation3], 128, 128, 8
    $region21: #{tpu_custom_call.1} parent=1 // pred_fallthru
      _
    // Predicated region
    $region22: #{tpu_custom_call.1} parent=1 // pred_check
      _
    $region23: #{tpu_custom_call.1} parent=1 // pred_check_branch
      %1374 = sbr.rel (0) target = $region25
    $region24: #{tpu_custom_call.1} parent=1 // pred_region
      %1375 = dma.done [#allocation3], 256
    $region25: #{tpu_custom_call.1} parent=1 // pred_fallthru
      _
    %1376 = vsyncpa [#allocation3], 1

</llo_original>
